<compile_context>
chip_gen: v5e
topology: v5e:2x2
jax: 0.10.0
libtpu: 0.0.40
codegen_flags: <defaults>
</compile_context>

<pallas_src>
import functools

import numpy as np
import jax
import jax.numpy as jnp
from jax import lax
from jax.experimental import pallas as pl
from jax.experimental.pallas import tpu as pltpu


DIM = 64
NUM_INTERNAL_CONV = 4
FEAT_PAD = 16   # pad tiny input-feature dims to a bf16-friendly sublane multiple
PAD_MULT = 16   # bf16 sublane-pack multiple for node / edge row counts


def _round_up(x, m):
    return ((x + m - 1) // m) * m


def _vmem_limit_bytes():
    """Per-generation VMEM budget: <= 3/4 of physical, capped at 96 MiB."""
    try:
        cap = int(pltpu.get_tpu_info().vmem_capacity_bytes)
    except Exception:
        cap = 128 * 1024 * 1024
    return max(16 * 1024 * 1024, min(cap * 3 // 4, 96 * 1024 * 1024))


# ----------------------------------------------------------------------------
# Fused MPNN kernel: encoders + num_conv message-passing steps + heads.
# Everything stays in VMEM / vregs for the whole forward pass.
# ----------------------------------------------------------------------------
def _mpnn_fused_kernel(
    node_x_ref, edge_x_ref, src_col_ref, dst_col_ref,
    w_ne_ref, b_ne_ref, w_ee_ref, b_ee_ref,
    wm12_ref, wm3_ref, bm_ref,
    wn_ref, bn_ref,
    we_ref, be_ref,
    w_nh_ref, b_nh_ref, w_eh_ref, b_eh_ref,
    node_out_ref, edge_out_ref,
    *, num_conv,
):
    f32 = jnp.float32
    bf16 = jnp.bfloat16

    n_pad = node_x_ref.shape[0]
    e_pad = edge_x_ref.shape[0]
    dim = bm_ref.shape[-1]

    src = src_col_ref[...]                                           # [E, 1] int32
    dst = dst_col_ref[...]                                           # [E, 1] int32

    # One-hot operators built directly in bf16 from the compare (never in HBM).
    # Padded edges carry index -1 so they select / contribute nothing.
    iota_n = lax.broadcasted_iota(jnp.int32, (e_pad, n_pad), 1)       # [E, N]
    iota_2n = lax.broadcasted_iota(jnp.int32, (e_pad, 2 * n_pad), 1)  # [E, 2N]
    g_dst = (dst == iota_n).astype(bf16)                              # [E, N]  scatter op
    dst_hi = jnp.where(dst >= 0, dst + n_pad, -1)                     # keep -1 sentinel
    # Fused gather operator: columns [0,N) match src, [N,2N) match dst.
    g = jnp.logical_or(iota_2n == src, iota_2n == dst_hi).astype(bf16)  # [E, 2N]

    def dot(a, b):
        # bf16 MXU inputs, f32 accumulation.
        return jnp.dot(a.astype(bf16), b.astype(bf16), preferred_element_type=f32)

    # Encoders.
    h = jnp.maximum(dot(node_x_ref[...], w_ne_ref[...]) + b_ne_ref[...], 0.0)  # [N, D]
    e = jnp.maximum(dot(edge_x_ref[...], w_ee_ref[...]) + b_ee_ref[...], 0.0)  # [E, D]

    # Message-passing convolutions (statically unrolled).
    for c in range(num_conv):
        # One 128-wide N-side matmul (W1|W2 merged) instead of two 64-wide ones.
        hw = dot(h, wm12_ref[c])                                      # [N, 2D]
        hw_stacked = jnp.concatenate([hw[:, :dim], hw[:, dim:]], axis=0)  # [2N, D]
        # Single K=2N gather contraction replaces dot(g_src,.)+dot(g_dst,.).
        msg = dot(g, hw_stacked) + dot(e, wm3_ref[c]) + bm_ref[c]
        msg = jnp.maximum(msg, 0.0)                                   # [E, D]
        # Scatter-add to dst: contract g_dst on its E axis (no s_dst operand).
        agg = lax.dot_general(
            g_dst, msg.astype(bf16),
            dimension_numbers=(((0,), (0,)), ((), ())),
            preferred_element_type=f32)                               # [N, D]
        # K=128 fused node / edge updates (weights pre-stacked [2D, D]).
        h = jnp.maximum(
            dot(jnp.concatenate([h, agg], axis=-1), wn_ref[c]) + bn_ref[c], 0.0)
        e = jnp.maximum(
            dot(jnp.concatenate([e, msg], axis=-1), we_ref[c]) + be_ref[c], 0.0)

    # Heads as f32 lane reductions (no extra kernels, no near-empty MXU passes).
    node_out_ref[...] = (
        jnp.sum(h * w_nh_ref[...], axis=-1, keepdims=True) + b_nh_ref[...]
    ).astype(node_out_ref.dtype)
    edge_out_ref[...] = (
        jnp.sum(e * w_eh_ref[...], axis=-1, keepdims=True) + b_eh_ref[...]
    ).astype(edge_out_ref.dtype)


_WEIGHT_KEYS = (
    "w_ne", "b_ne", "w_ee", "b_ee",
    "wm12", "wm3", "bm", "wn", "bn", "we", "be",
    "w_nh", "b_nh", "w_eh", "b_eh",
)


def _full_spec(shape):
    shape = tuple(int(s) for s in shape)
    zeros = (0,) * len(shape)
    return pl.BlockSpec(shape, lambda i: zeros)


@functools.lru_cache(maxsize=None)
def _build_mpnn_call(n_pad, e_pad, num_conv):
    """Shape-bucketed, jitted pallas_call builder (hoists tracing out of the
    per-forward path — the dominant wall-clock cost at demo sizes)."""
    kernel = functools.partial(_mpnn_fused_kernel, num_conv=num_conv)
    vmem_limit = _vmem_limit_bytes()

    def run(nx, ex, src_col, dst_col, weights):
        args = [nx, ex, src_col, dst_col] + [weights[k] for k in _WEIGHT_KEYS]
        in_specs = [_full_spec(a.shape) for a in args]
        return pl.pallas_call(
            kernel,
            out_shape=(
                jax.ShapeDtypeStruct((n_pad, 1), jnp.float32),
                jax.ShapeDtypeStruct((e_pad, 1), jnp.float32),
            ),
            grid=(1,),
            in_specs=in_specs,
            out_specs=(
                pl.BlockSpec((n_pad, 1), lambda i: (0, 0)),
                pl.BlockSpec((e_pad, 1), lambda i: (0, 0)),
            ),
            compiler_params=pltpu.CompilerParams(
                dimension_semantics=("arbitrary",),
                vmem_limit_bytes=vmem_limit,
            ),
        )(*args)

    return jax.jit(run)


def mpnn_forward_fused(kparams, node_x, edge_x, edge_index, n_nodes):
    """Returns (node_scores [N,1], edge_scores [E,1]) via one fused pallas_call."""
    node_x = np.asarray(node_x, np.float32)
    edge_x = np.asarray(edge_x, np.float32)
    n = int(n_nodes)
    e = int(edge_index.shape[1])
    n_pad = max(_round_up(n, PAD_MULT), PAD_MULT)
    e_pad = max(_round_up(e, PAD_MULT), PAD_MULT)
    fpad = kparams["f_pad"]

    nx = np.zeros((n_pad, fpad), np.float32)
    nx[:n, : node_x.shape[1]] = node_x
    ex = np.zeros((e_pad, fpad), np.float32)
    ex[:e, : edge_x.shape[1]] = edge_x
    src_col = np.full((e_pad, 1), -1, np.int32)
    src_col[:e, 0] = edge_index[0]
    dst_col = np.full((e_pad, 1), -1, np.int32)
    dst_col[:e, 0] = edge_index[1]

    weights = {k: kparams[k] for k in _WEIGHT_KEYS}
    run = _build_mpnn_call(n_pad, e_pad, NUM_INTERNAL_CONV)
    node_s, edge_s = run(
        jnp.asarray(nx), jnp.asarray(ex),
        jnp.asarray(src_col), jnp.asarray(dst_col), weights)
    return node_s[:n], edge_s[:e]


# ----------------------------------------------------------------------------
# MPNN parameters (stand-in for ns.model.agg_interp.MPNN: dim=64, 4 convs)
# TODO(synk): ns.model.agg_interp.MPNN source is unavailable; this is a
# structurally representative message-passing net with the same I/O signature.
# ----------------------------------------------------------------------------
def _init_linear(key, d_in, d_out):
    kw, kb = jax.random.split(key)
    scale = 1.0 / np.sqrt(d_in)
    w = jax.random.uniform(kw, (d_in, d_out), jnp.float32, -scale, scale)
    b = jax.random.uniform(kb, (1, d_out), jnp.float32, -scale, scale)
    return w, b


def init_mpnn_params(key, dim, num_internal_conv, in_node_feats, in_edge_feats):
    keys = jax.random.split(key, 4 + 3 * num_internal_conv)
    params = {
        "node_enc": _init_linear(keys[0], in_node_feats, dim),
        "edge_enc": _init_linear(keys[1], in_edge_feats, dim),
        "node_head": _init_linear(keys[2], dim, 1),
        "edge_head": _init_linear(keys[3], dim, 1),
        "convs": [],
    }
    for c in range(num_internal_conv):
        k0, k1, k2 = keys[4 + 3 * c], keys[5 + 3 * c], keys[6 + 3 * c]
        params["convs"].append(
            {
                "msg": _init_linear(k0, 3 * dim, dim),    # acts on [h[src], h[dst], e]
                "node": _init_linear(k1, 2 * dim, dim),   # acts on [h, agg]
                "edge": _init_linear(k2, 2 * dim, dim),   # acts on [e, msg]
            }
        )
    return params


def prepare_kernel_params(params, dim):
    """Pre-pad / pre-merge / pre-cast weights once (MXU operands -> bf16)."""
    def pad_k_bf16(w, kp):
        w = jnp.asarray(w, jnp.float32)
        return jnp.pad(w, ((0, kp - w.shape[0]), (0, 0))).astype(jnp.bfloat16)

    kp = {
        "f_pad": FEAT_PAD,
        "w_ne": pad_k_bf16(params["node_enc"][0], FEAT_PAD),
        "b_ne": jnp.asarray(params["node_enc"][1], jnp.float32),
        "w_ee": pad_k_bf16(params["edge_enc"][0], FEAT_PAD),
        "b_ee": jnp.asarray(params["edge_enc"][1], jnp.float32),
        # Heads stay f32: they run as VPU reductions, not on the MXU.
        "w_nh": jnp.asarray(params["node_head"][0], jnp.float32).T,            # [1, D]
        "b_nh": jnp.asarray(params["node_head"][1], jnp.float32).reshape(1, 1),
        "w_eh": jnp.asarray(params["edge_head"][0], jnp.float32).T,            # [1, D]
        "b_eh": jnp.asarray(params["edge_head"][1], jnp.float32).reshape(1, 1),
    }
    wm12, wm3, bm = [], [], []
    wn, bn, we, be = [], [], [], []
    for conv in params["convs"]:
        wm, b = conv["msg"]          # [3D, D]: [h_src block; h_dst block; e block]
        # Merge W1|W2 column-wise -> one 128-wide output matmul per conv.
        wm12.append(jnp.concatenate([wm[:dim], wm[dim:2 * dim]], axis=1))  # [D, 2D]
        wm3.append(wm[2 * dim:])                                           # [D, D]
        bm.append(b)
        w2, b2 = conv["node"]        # [2D, D]: acts on concat([h, agg], -1), K=128
        wn.append(w2); bn.append(b2)
        w2, b2 = conv["edge"]        # [2D, D]: acts on concat([e, msg], -1), K=128
        we.append(w2); be.append(b2)

    to_bf = lambda xs: jnp.stack(xs).astype(jnp.bfloat16)     # [C, ...]
    to_f32 = lambda xs: jnp.stack(xs).astype(jnp.float32)     # [C, 1, D]
    kp.update(
        wm12=to_bf(wm12), wm3=to_bf(wm3), bm=to_f32(bm),
        wn=to_bf(wn), bn=to_f32(bn),
        we=to_bf(we), be=to_f32(be),
    )
    return kp


# ----------------------------------------------------------------------------
# Graph construction + union-find glue (host side, mirrors ns.lib / ns.model.data)
# ----------------------------------------------------------------------------
def graph_from_matrix_basic(A):
    rows, cols = np.nonzero(A)
    edge_index = np.stack([rows, cols]).astype(np.int32)          # [2, E]
    edge_attr = A[rows, cols].reshape(-1, 1).astype(np.float32)   # 1 edge feature
    node_x = np.ones((A.shape[0], 1), np.float32)
    return node_x, edge_index, edge_attr


def graph_from_matrix(A, agg_assign):
    # TODO(synk): ns.model.data.graph_from_matrix exact edge features unknown;
    # use [A_ij, same-aggregate indicator] to provide the 2 edge features.
    rows, cols = np.nonzero(A)
    edge_index = np.stack([rows, cols]).astype(np.int32)
    same = (agg_assign[rows] == agg_assign[cols]).astype(np.float32)
    edge_attr = np.stack([A[rows, cols].astype(np.float32), same], axis=1)
    node_x = np.ones((A.shape[0], 1), np.float32)
    return node_x, edge_index, edge_attr


class DisjointSets:
    def __init__(self, n):
        self.parent = list(range(n))

    def find(self, x):
        while self.parent[x] != x:
            self.parent[x] = self.parent[self.parent[x]]
            x = self.parent[x]
        return x

    def union(self, a, b):
        ra, rb = self.find(a), self.find(b)
        if ra == rb:
            return False
        self.parent[rb] = ra
        return True

    def get_disjoint_sets(self):
        groups, order = {}, []
        for i in range(len(self.parent)):
            r = self.find(i)
            if r not in groups:
                groups[r] = []
                order.append(r)
            groups[r].append(i)
        return [groups[r] for r in order]


# ----------------------------------------------------------------------------
# AggEdgeRemovalNet
# ----------------------------------------------------------------------------
class AggEdgeRemovalNetPallas:
    def __init__(self, dim=64, num_conv=2, iterations=4, key=None):
        if key is None:
            key = jax.random.PRNGKey(0)
        k_edge, k_p = jax.random.split(key)
        # EdgeNet: 1 input edge feature; PNet: 2 input edge features.
        edge_params = init_mpnn_params(k_edge, dim, NUM_INTERNAL_CONV, 1, 1)
        p_params = init_mpnn_params(k_p, dim, NUM_INTERNAL_CONV, 1, 2)
        self.edge_kparams = prepare_kernel_params(edge_params, dim)
        self.p_kparams = prepare_kernel_params(p_params, dim)

    def forward(self, A, alpha):
        A = np.asarray(A, np.float32)
        m, n = A.shape
        k = int(np.ceil(alpha * m))

        # --- EdgeNet on the raw graph (one fused Pallas kernel) -------------
        node_x, ei_s, ea_s = graph_from_matrix_basic(A)
        _, a_edges = mpnn_forward_fused(self.edge_kparams, node_x, ea_s, ei_s, n)
        a_vals_np = np.asarray(a_edges).reshape(-1)

        # argsort descending + sequential union-find edge contraction (host)
        edge_argsort = np.argsort(-a_vals_np, kind="stable")
        num_sets = n
        ds = DisjointSets(n)
        i = 0
        while num_sets > k:
            u = int(ei_s[0, edge_argsort[i]])
            v = int(ei_s[1, edge_argsort[i]])
            if ds.union(u, v):
                num_sets -= 1
            i += 1
        sets = ds.get_disjoint_sets()

        agg_assign = np.zeros(n, np.int32)
        agg_dense = np.zeros((m, k), np.float32)   # dense stand-in for sparse agg
        for col, s in enumerate(sets):
            for row in s:
                agg_assign[row] = col
                agg_dense[row, col] = 1.0

        # --- PNet on the aggregate-augmented graph (one fused Pallas kernel) -
        node_x2, ei_p, ea_p = graph_from_matrix(A, agg_assign)
        _, p_edges = mpnn_forward_fused(self.p_kparams, node_x2, ea_p, ei_p, n)

        # P_T = P_hat @ agg computed directly as an O(E) scatter-add: agg is
        # one-hot per row, so column j of P_hat maps to aggregate agg_assign[j].
        # (Assumes unique (row, col) edge pairs — guaranteed by np.nonzero.)
        p_vals = jnp.reshape(p_edges, (-1,))
        P_T = jnp.zeros((m, k), jnp.float32).at[
            ei_p[0], agg_assign[ei_p[1]]].add(p_vals)

        # Dense stand-in for the sparse COO of EdgeNet scores (coalesce == sum).
        a_vals = jnp.reshape(a_edges, (-1,))
        A_scores = jnp.zeros((m, n), jnp.float32).at[ei_s[0], ei_s[1]].add(a_vals)

        return jnp.asarray(agg_dense), P_T, A_scores


# ----------------------------------------------------------------------------
if __name__ == "__main__":
    key = jax.random.PRNGKey(0)

    # Small deterministic SPD test matrix: 1-D Laplacian, n = 16
    n = 16
    A = np.zeros((n, n), np.float32)
    for i in range(n):
        A[i, i] = 2.0
        if i + 1 < n:
            A[i, i + 1] = -1.0
            A[i + 1, i] = -1.0

    alpha = 0.5
    net = AggEdgeRemovalNetPallas(dim=64, key=key)
    agg_T, P_T, A_scores = net.forward(A, alpha)
    jax.block_until_ready((agg_T, P_T, A_scores))

    kk = int(np.ceil(alpha * n))
    assert agg_T.shape == (n, kk)
    assert P_T.shape == (n, kk)
    assert A_scores.shape == (n, n)
    assert np.all(np.isfinite(np.asarray(P_T)))
    assert np.all(np.isfinite(np.asarray(A_scores)))
    print("KERNEL_OK")
</pallas_src>

<mosaic_0001>
module attributes {stable_mosaic.version = 11 : i64} {
  func.func @_mpnn_fused_kernel(%arg0: i32, %arg1: memref<16x16xf32, #tpu.memory_space<vmem>>, %arg2: memref<48x16xf32, #tpu.memory_space<vmem>>, %arg3: memref<48x1xi32, #tpu.memory_space<vmem>>, %arg4: memref<48x1xi32, #tpu.memory_space<vmem>>, %arg5: memref<16x64xbf16, #tpu.memory_space<vmem>>, %arg6: memref<1x64xf32, #tpu.memory_space<vmem>>, %arg7: memref<16x64xbf16, #tpu.memory_space<vmem>>, %arg8: memref<1x64xf32, #tpu.memory_space<vmem>>, %arg9: memref<4x64x128xbf16, #tpu.memory_space<vmem>>, %arg10: memref<4x64x64xbf16, #tpu.memory_space<vmem>>, %arg11: memref<4x1x64xf32, #tpu.memory_space<vmem>>, %arg12: memref<4x128x64xbf16, #tpu.memory_space<vmem>>, %arg13: memref<4x1x64xf32, #tpu.memory_space<vmem>>, %arg14: memref<4x128x64xbf16, #tpu.memory_space<vmem>>, %arg15: memref<4x1x64xf32, #tpu.memory_space<vmem>>, %arg16: memref<1x64xf32, #tpu.memory_space<vmem>>, %arg17: memref<1x1xf32, #tpu.memory_space<vmem>>, %arg18: memref<1x64xf32, #tpu.memory_space<vmem>>, %arg19: memref<1x1xf32, #tpu.memory_space<vmem>>, %arg20: memref<16x1xf32, #tpu.memory_space<vmem>>, %arg21: memref<48x1xf32, #tpu.memory_space<vmem>>) attributes {dimension_semantics = [#tpu.dimension_semantics<arbitrary>], iteration_bounds = array<i64: 1>, scalar_prefetch = 0 : i64, scratch_operands = 0 : i64, tpu.core_type = #tpu.core_type<tc>, window_params = [{pipeline_mode = #tpu.pipeline_mode<synchronous>, transform_indices = @transform_0, window_bounds = array<i64: 16, 16>}, {pipeline_mode = #tpu.pipeline_mode<synchronous>, transform_indices = @transform_1, window_bounds = array<i64: 48, 16>}, {pipeline_mode = #tpu.pipeline_mode<synchronous>, transform_indices = @transform_2, window_bounds = array<i64: 48, 1>}, {pipeline_mode = #tpu.pipeline_mode<synchronous>, transform_indices = @transform_3, window_bounds = array<i64: 48, 1>}, {pipeline_mode = #tpu.pipeline_mode<synchronous>, transform_indices = @transform_4, window_bounds = array<i64: 16, 64>}, {pipeline_mode = #tpu.pipeline_mode<synchronous>, transform_indices = @transform_5, window_bounds = array<i64: 1, 64>}, {pipeline_mode = #tpu.pipeline_mode<synchronous>, transform_indices = @transform_6, window_bounds = array<i64: 16, 64>}, {pipeline_mode = #tpu.pipeline_mode<synchronous>, transform_indices = @transform_7, window_bounds = array<i64: 1, 64>}, {pipeline_mode = #tpu.pipeline_mode<synchronous>, transform_indices = @transform_8, window_bounds = array<i64: 4, 64, 128>}, {pipeline_mode = #tpu.pipeline_mode<synchronous>, transform_indices = @transform_9, window_bounds = array<i64: 4, 64, 64>}, {pipeline_mode = #tpu.pipeline_mode<synchronous>, transform_indices = @transform_10, window_bounds = array<i64: 4, 1, 64>}, {pipeline_mode = #tpu.pipeline_mode<synchronous>, transform_indices = @transform_11, window_bounds = array<i64: 4, 128, 64>}, {pipeline_mode = #tpu.pipeline_mode<synchronous>, transform_indices = @transform_12, window_bounds = array<i64: 4, 1, 64>}, {pipeline_mode = #tpu.pipeline_mode<synchronous>, transform_indices = @transform_13, window_bounds = array<i64: 4, 128, 64>}, {pipeline_mode = #tpu.pipeline_mode<synchronous>, transform_indices = @transform_14, window_bounds = array<i64: 4, 1, 64>}, {pipeline_mode = #tpu.pipeline_mode<synchronous>, transform_indices = @transform_15, window_bounds = array<i64: 1, 64>}, {pipeline_mode = #tpu.pipeline_mode<synchronous>, transform_indices = @transform_16, window_bounds = array<i64: 1, 1>}, {pipeline_mode = #tpu.pipeline_mode<synchronous>, transform_indices = @transform_17, window_bounds = array<i64: 1, 64>}, {pipeline_mode = #tpu.pipeline_mode<synchronous>, transform_indices = @transform_18, window_bounds = array<i64: 1, 1>}, {pipeline_mode = #tpu.pipeline_mode<synchronous>, transform_indices = @transform_19, window_bounds = array<i64: 16, 1>}, {pipeline_mode = #tpu.pipeline_mode<synchronous>, transform_indices = @transform_20, window_bounds = array<i64: 48, 1>}]} {
    %c0 = arith.constant 0 : index
    %c0_0 = arith.constant 0 : index
    %0 = vector.load %arg3[%c0, %c0_0] : memref<48x1xi32, #tpu.memory_space<vmem>>, vector<48x1xi32>
    %c0_1 = arith.constant 0 : index
    %c0_2 = arith.constant 0 : index
    %1 = vector.load %arg4[%c0_1, %c0_2] : memref<48x1xi32, #tpu.memory_space<vmem>>, vector<48x1xi32>
    %2 = tpu.iota {dimensions = array<i32: 1>} : vector<48x16xi32>
    %3 = tpu.iota {dimensions = array<i32: 1>} : vector<48x32xi32>
    %4 = vector.broadcast %1 : vector<48x1xi32> to vector<48x16xi32>
    %5 = arith.cmpi eq, %4, %2 : vector<48x16xi32>
    %6 = arith.extui %5 : vector<48x16xi1> to vector<48x16xi32>
    %7 = arith.sitofp %6 : vector<48x16xi32> to vector<48x16xf32>
    %8 = arith.truncf %7 : vector<48x16xf32> to vector<48x16xbf16>
    %c0_i32 = arith.constant 0 : i32
    %9 = vector.broadcast %c0_i32 : i32 to vector<48x1xi32>
    %10 = arith.cmpi sge, %1, %9 : vector<48x1xi32>
    %c16_i32 = arith.constant 16 : i32
    %11 = vector.broadcast %c16_i32 : i32 to vector<48x1xi32>
    %12 = arith.addi %1, %11 : vector<48x1xi32>
    %c-1_i32 = arith.constant -1 : i32
    %13 = vector.broadcast %c-1_i32 : i32 to vector<48x1xi32>
    %14 = arith.select %10, %12, %13 : vector<48x1xi1>, vector<48x1xi32>
    %15 = vector.broadcast %0 : vector<48x1xi32> to vector<48x32xi32>
    %16 = arith.cmpi eq, %3, %15 : vector<48x32xi32>
    %17 = vector.broadcast %14 : vector<48x1xi32> to vector<48x32xi32>
    %18 = arith.cmpi eq, %3, %17 : vector<48x32xi32>
    %19 = arith.ori %16, %18 : vector<48x32xi1>
    %20 = arith.extui %19 : vector<48x32xi1> to vector<48x32xi32>
    %21 = arith.sitofp %20 : vector<48x32xi32> to vector<48x32xf32>
    %22 = arith.truncf %21 : vector<48x32xf32> to vector<48x32xbf16>
    %c0_3 = arith.constant 0 : index
    %c0_4 = arith.constant 0 : index
    %23 = vector.load %arg1[%c0_3, %c0_4] : memref<16x16xf32, #tpu.memory_space<vmem>>, vector<16x16xf32>
    %c0_5 = arith.constant 0 : index
    %c0_6 = arith.constant 0 : index
    %24 = vector.load %arg5[%c0_5, %c0_6] : memref<16x64xbf16, #tpu.memory_space<vmem>>, vector<16x64xbf16>
    %25 = arith.truncf %23 : vector<16x16xf32> to vector<16x16xbf16>
    %cst = arith.constant dense<0.000000e+00> : vector<16x64xf32>
    %26 = tpu.matmul %25, %24, %cst {dimension_numbers = #tpu.dot_dimension_numbers<[1], [0], [0], [1], [0, 0, 1, 1], [], []>} : vector<16x16xbf16>, vector<16x64xbf16>, vector<16x64xf32> -> vector<16x64xf32>
    %c0_7 = arith.constant 0 : index
    %c0_8 = arith.constant 0 : index
    %27 = vector.load %arg6[%c0_7, %c0_8] : memref<1x64xf32, #tpu.memory_space<vmem>>, vector<1x64xf32>
    %28 = vector.broadcast %27 : vector<1x64xf32> to vector<16x64xf32>
    %29 = arith.addf %26, %28 : vector<16x64xf32>
    %cst_9 = arith.constant 0.000000e+00 : f32
    %30 = vector.broadcast %cst_9 : f32 to vector<16x64xf32>
    %31 = arith.maximumf %29, %30 : vector<16x64xf32>
    %c0_10 = arith.constant 0 : index
    %c0_11 = arith.constant 0 : index
    %32 = vector.load %arg2[%c0_10, %c0_11] : memref<48x16xf32, #tpu.memory_space<vmem>>, vector<48x16xf32>
    %c0_12 = arith.constant 0 : index
    %c0_13 = arith.constant 0 : index
    %33 = vector.load %arg7[%c0_12, %c0_13] : memref<16x64xbf16, #tpu.memory_space<vmem>>, vector<16x64xbf16>
    %34 = arith.truncf %32 : vector<48x16xf32> to vector<48x16xbf16>
    %cst_14 = arith.constant dense<0.000000e+00> : vector<48x64xf32>
    %35 = tpu.matmul %34, %33, %cst_14 {dimension_numbers = #tpu.dot_dimension_numbers<[1], [0], [0], [1], [0, 0, 1, 1], [], []>} : vector<48x16xbf16>, vector<16x64xbf16>, vector<48x64xf32> -> vector<48x64xf32>
    %c0_15 = arith.constant 0 : index
    %c0_16 = arith.constant 0 : index
    %36 = vector.load %arg8[%c0_15, %c0_16] : memref<1x64xf32, #tpu.memory_space<vmem>>, vector<1x64xf32>
    %37 = vector.broadcast %36 : vector<1x64xf32> to vector<48x64xf32>
    %38 = arith.addf %35, %37 : vector<48x64xf32>
    %cst_17 = arith.constant 0.000000e+00 : f32
    %39 = vector.broadcast %cst_17 : f32 to vector<48x64xf32>
    %40 = arith.maximumf %38, %39 : vector<48x64xf32>
    %c0_18 = arith.constant 0 : index
    %c0_19 = arith.constant 0 : index
    %c0_20 = arith.constant 0 : index
    %41 = vector.load %arg9[%c0_18, %c0_19, %c0_20] : memref<4x64x128xbf16, #tpu.memory_space<vmem>>, vector<1x64x128xbf16>
    %42 = vector.shape_cast %41 : vector<1x64x128xbf16> to vector<64x128xbf16>
    %43 = arith.truncf %31 : vector<16x64xf32> to vector<16x64xbf16>
    %cst_21 = arith.constant dense<0.000000e+00> : vector<16x128xf32>
    %44 = tpu.matmul %43, %42, %cst_21 {dimension_numbers = #tpu.dot_dimension_numbers<[1], [0], [0], [1], [0, 0, 1, 1], [], []>} : vector<16x64xbf16>, vector<64x128xbf16>, vector<16x128xf32> -> vector<16x128xf32>
    %45 = vector.extract_strided_slice %44 {offsets = [0, 0], sizes = [16, 64], strides = [1, 1]} : vector<16x128xf32> to vector<16x64xf32>
    %46 = vector.extract_strided_slice %44 {offsets = [0, 64], sizes = [16, 64], strides = [1, 1]} : vector<16x128xf32> to vector<16x64xf32>
    %47 = tpu.concatenate %45, %46 in 0 : vector<16x64xf32>, vector<16x64xf32> -> vector<32x64xf32>
    %48 = arith.truncf %47 : vector<32x64xf32> to vector<32x64xbf16>
    %cst_22 = arith.constant dense<0.000000e+00> : vector<48x64xf32>
    %49 = tpu.matmul %22, %48, %cst_22 {dimension_numbers = #tpu.dot_dimension_numbers<[1], [0], [0], [1], [0, 0, 1, 1], [], []>} : vector<48x32xbf16>, vector<32x64xbf16>, vector<48x64xf32> -> vector<48x64xf32>
    %c0_23 = arith.constant 0 : index
    %c0_24 = arith.constant 0 : index
    %c0_25 = arith.constant 0 : index
    %50 = vector.load %arg10[%c0_23, %c0_24, %c0_25] : memref<4x64x64xbf16, #tpu.memory_space<vmem>>, vector<1x64x64xbf16>
    %51 = vector.shape_cast %50 : vector<1x64x64xbf16> to vector<64x64xbf16>
    %52 = arith.truncf %40 : vector<48x64xf32> to vector<48x64xbf16>
    %cst_26 = arith.constant dense<0.000000e+00> : vector<48x64xf32>
    %53 = tpu.matmul %52, %51, %cst_26 {dimension_numbers = #tpu.dot_dimension_numbers<[1], [0], [0], [1], [0, 0, 1, 1], [], []>} : vector<48x64xbf16>, vector<64x64xbf16>, vector<48x64xf32> -> vector<48x64xf32>
    %54 = arith.addf %49, %53 : vector<48x64xf32>
    %c0_27 = arith.constant 0 : index
    %c0_28 = arith.constant 0 : index
    %c0_29 = arith.constant 0 : index
    %55 = vector.load %arg11[%c0_27, %c0_28, %c0_29] : memref<4x1x64xf32, #tpu.memory_space<vmem>>, vector<1x1x64xf32>
    %56 = vector.shape_cast %55 : vector<1x1x64xf32> to vector<1x64xf32>
    %57 = vector.broadcast %56 : vector<1x64xf32> to vector<48x64xf32>
    %58 = arith.addf %54, %57 : vector<48x64xf32>
    %cst_30 = arith.constant 0.000000e+00 : f32
    %59 = vector.broadcast %cst_30 : f32 to vector<48x64xf32>
    %60 = arith.maximumf %58, %59 : vector<48x64xf32>
    %61 = arith.truncf %60 : vector<48x64xf32> to vector<48x64xbf16>
    %cst_31 = arith.constant dense<0.000000e+00> : vector<16x64xf32>
    %62 = tpu.matmul %8, %61, %cst_31 {dimension_numbers = #tpu.dot_dimension_numbers<[0], [0], [1], [1], [0, 1, 1, 1], [], []>} : vector<48x16xbf16>, vector<48x64xbf16>, vector<16x64xf32> -> vector<16x64xf32>
    %63 = tpu.concatenate %31, %62 in 1 : vector<16x64xf32>, vector<16x64xf32> -> vector<16x128xf32>
    %c0_32 = arith.constant 0 : index
    %c0_33 = arith.constant 0 : index
    %c0_34 = arith.constant 0 : index
    %64 = vector.load %arg12[%c0_32, %c0_33, %c0_34] : memref<4x128x64xbf16, #tpu.memory_space<vmem>>, vector<1x128x64xbf16>
    %65 = vector.shape_cast %64 : vector<1x128x64xbf16> to vector<128x64xbf16>
    %66 = arith.truncf %63 : vector<16x128xf32> to vector<16x128xbf16>
    %cst_35 = arith.constant dense<0.000000e+00> : vector<16x64xf32>
    %67 = tpu.matmul %66, %65, %cst_35 {dimension_numbers = #tpu.dot_dimension_numbers<[1], [0], [0], [1], [0, 0, 1, 1], [], []>} : vector<16x128xbf16>, vector<128x64xbf16>, vector<16x64xf32> -> vector<16x64xf32>
    %c0_36 = arith.constant 0 : index
    %c0_37 = arith.constant 0 : index
    %c0_38 = arith.constant 0 : index
    %68 = vector.load %arg13[%c0_36, %c0_37, %c0_38] : memref<4x1x64xf32, #tpu.memory_space<vmem>>, vector<1x1x64xf32>
    %69 = vector.shape_cast %68 : vector<1x1x64xf32> to vector<1x64xf32>
    %70 = vector.broadcast %69 : vector<1x64xf32> to vector<16x64xf32>
    %71 = arith.addf %67, %70 : vector<16x64xf32>
    %cst_39 = arith.constant 0.000000e+00 : f32
    %72 = vector.broadcast %cst_39 : f32 to vector<16x64xf32>
    %73 = arith.maximumf %71, %72 : vector<16x64xf32>
    %74 = tpu.concatenate %40, %60 in 1 : vector<48x64xf32>, vector<48x64xf32> -> vector<48x128xf32>
    %c0_40 = arith.constant 0 : index
    %c0_41 = arith.constant 0 : index
    %c0_42 = arith.constant 0 : index
    %75 = vector.load %arg14[%c0_40, %c0_41, %c0_42] : memref<4x128x64xbf16, #tpu.memory_space<vmem>>, vector<1x128x64xbf16>
    %76 = vector.shape_cast %75 : vector<1x128x64xbf16> to vector<128x64xbf16>
    %77 = arith.truncf %74 : vector<48x128xf32> to vector<48x128xbf16>
    %cst_43 = arith.constant dense<0.000000e+00> : vector<48x64xf32>
    %78 = tpu.matmul %77, %76, %cst_43 {dimension_numbers = #tpu.dot_dimension_numbers<[1], [0], [0], [1], [0, 0, 1, 1], [], []>} : vector<48x128xbf16>, vector<128x64xbf16>, vector<48x64xf32> -> vector<48x64xf32>
    %c0_44 = arith.constant 0 : index
    %c0_45 = arith.constant 0 : index
    %c0_46 = arith.constant 0 : index
    %79 = vector.load %arg15[%c0_44, %c0_45, %c0_46] : memref<4x1x64xf32, #tpu.memory_space<vmem>>, vector<1x1x64xf32>
    %80 = vector.shape_cast %79 : vector<1x1x64xf32> to vector<1x64xf32>
    %81 = vector.broadcast %80 : vector<1x64xf32> to vector<48x64xf32>
    %82 = arith.addf %78, %81 : vector<48x64xf32>
    %cst_47 = arith.constant 0.000000e+00 : f32
    %83 = vector.broadcast %cst_47 : f32 to vector<48x64xf32>
    %84 = arith.maximumf %82, %83 : vector<48x64xf32>
    %c1 = arith.constant 1 : index
    %c0_48 = arith.constant 0 : index
    %c0_49 = arith.constant 0 : index
    %85 = vector.load %arg9[%c1, %c0_48, %c0_49] : memref<4x64x128xbf16, #tpu.memory_space<vmem>>, vector<1x64x128xbf16>
    %86 = vector.shape_cast %85 : vector<1x64x128xbf16> to vector<64x128xbf16>
    %87 = arith.truncf %73 : vector<16x64xf32> to vector<16x64xbf16>
    %cst_50 = arith.constant dense<0.000000e+00> : vector<16x128xf32>
    %88 = tpu.matmul %87, %86, %cst_50 {dimension_numbers = #tpu.dot_dimension_numbers<[1], [0], [0], [1], [0, 0, 1, 1], [], []>} : vector<16x64xbf16>, vector<64x128xbf16>, vector<16x128xf32> -> vector<16x128xf32>
    %89 = vector.extract_strided_slice %88 {offsets = [0, 0], sizes = [16, 64], strides = [1, 1]} : vector<16x128xf32> to vector<16x64xf32>
    %90 = vector.extract_strided_slice %88 {offsets = [0, 64], sizes = [16, 64], strides = [1, 1]} : vector<16x128xf32> to vector<16x64xf32>
    %91 = tpu.concatenate %89, %90 in 0 : vector<16x64xf32>, vector<16x64xf32> -> vector<32x64xf32>
    %92 = arith.truncf %91 : vector<32x64xf32> to vector<32x64xbf16>
    %cst_51 = arith.constant dense<0.000000e+00> : vector<48x64xf32>
    %93 = tpu.matmul %22, %92, %cst_51 {dimension_numbers = #tpu.dot_dimension_numbers<[1], [0], [0], [1], [0, 0, 1, 1], [], []>} : vector<48x32xbf16>, vector<32x64xbf16>, vector<48x64xf32> -> vector<48x64xf32>
    %c1_52 = arith.constant 1 : index
    %c0_53 = arith.constant 0 : index
    %c0_54 = arith.constant 0 : index
    %94 = vector.load %arg10[%c1_52, %c0_53, %c0_54] : memref<4x64x64xbf16, #tpu.memory_space<vmem>>, vector<1x64x64xbf16>
    %95 = vector.shape_cast %94 : vector<1x64x64xbf16> to vector<64x64xbf16>
    %96 = arith.truncf %84 : vector<48x64xf32> to vector<48x64xbf16>
    %cst_55 = arith.constant dense<0.000000e+00> : vector<48x64xf32>
    %97 = tpu.matmul %96, %95, %cst_55 {dimension_numbers = #tpu.dot_dimension_numbers<[1], [0], [0], [1], [0, 0, 1, 1], [], []>} : vector<48x64xbf16>, vector<64x64xbf16>, vector<48x64xf32> -> vector<48x64xf32>
    %98 = arith.addf %93, %97 : vector<48x64xf32>
    %c1_56 = arith.constant 1 : index
    %c0_57 = arith.constant 0 : index
    %c0_58 = arith.constant 0 : index
    %99 = vector.load %arg11[%c1_56, %c0_57, %c0_58] : memref<4x1x64xf32, #tpu.memory_space<vmem>>, vector<1x1x64xf32>
    %100 = vector.shape_cast %99 : vector<1x1x64xf32> to vector<1x64xf32>
    %101 = vector.broadcast %100 : vector<1x64xf32> to vector<48x64xf32>
    %102 = arith.addf %98, %101 : vector<48x64xf32>
    %cst_59 = arith.constant 0.000000e+00 : f32
    %103 = vector.broadcast %cst_59 : f32 to vector<48x64xf32>
    %104 = arith.maximumf %102, %103 : vector<48x64xf32>
    %105 = arith.truncf %104 : vector<48x64xf32> to vector<48x64xbf16>
    %cst_60 = arith.constant dense<0.000000e+00> : vector<16x64xf32>
    %106 = tpu.matmul %8, %105, %cst_60 {dimension_numbers = #tpu.dot_dimension_numbers<[0], [0], [1], [1], [0, 1, 1, 1], [], []>} : vector<48x16xbf16>, vector<48x64xbf16>, vector<16x64xf32> -> vector<16x64xf32>
    %107 = tpu.concatenate %73, %106 in 1 : vector<16x64xf32>, vector<16x64xf32> -> vector<16x128xf32>
    %c1_61 = arith.constant 1 : index
    %c0_62 = arith.constant 0 : index
    %c0_63 = arith.constant 0 : index
    %108 = vector.load %arg12[%c1_61, %c0_62, %c0_63] : memref<4x128x64xbf16, #tpu.memory_space<vmem>>, vector<1x128x64xbf16>
    %109 = vector.shape_cast %108 : vector<1x128x64xbf16> to vector<128x64xbf16>
    %110 = arith.truncf %107 : vector<16x128xf32> to vector<16x128xbf16>
    %cst_64 = arith.constant dense<0.000000e+00> : vector<16x64xf32>
    %111 = tpu.matmul %110, %109, %cst_64 {dimension_numbers = #tpu.dot_dimension_numbers<[1], [0], [0], [1], [0, 0, 1, 1], [], []>} : vector<16x128xbf16>, vector<128x64xbf16>, vector<16x64xf32> -> vector<16x64xf32>
    %c1_65 = arith.constant 1 : index
    %c0_66 = arith.constant 0 : index
    %c0_67 = arith.constant 0 : index
    %112 = vector.load %arg13[%c1_65, %c0_66, %c0_67] : memref<4x1x64xf32, #tpu.memory_space<vmem>>, vector<1x1x64xf32>
    %113 = vector.shape_cast %112 : vector<1x1x64xf32> to vector<1x64xf32>
    %114 = vector.broadcast %113 : vector<1x64xf32> to vector<16x64xf32>
    %115 = arith.addf %111, %114 : vector<16x64xf32>
    %cst_68 = arith.constant 0.000000e+00 : f32
    %116 = vector.broadcast %cst_68 : f32 to vector<16x64xf32>
    %117 = arith.maximumf %115, %116 : vector<16x64xf32>
    %118 = tpu.concatenate %84, %104 in 1 : vector<48x64xf32>, vector<48x64xf32> -> vector<48x128xf32>
    %c1_69 = arith.constant 1 : index
    %c0_70 = arith.constant 0 : index
    %c0_71 = arith.constant 0 : index
    %119 = vector.load %arg14[%c1_69, %c0_70, %c0_71] : memref<4x128x64xbf16, #tpu.memory_space<vmem>>, vector<1x128x64xbf16>
    %120 = vector.shape_cast %119 : vector<1x128x64xbf16> to vector<128x64xbf16>
    %121 = arith.truncf %118 : vector<48x128xf32> to vector<48x128xbf16>
    %cst_72 = arith.constant dense<0.000000e+00> : vector<48x64xf32>
    %122 = tpu.matmul %121, %120, %cst_72 {dimension_numbers = #tpu.dot_dimension_numbers<[1], [0], [0], [1], [0, 0, 1, 1], [], []>} : vector<48x128xbf16>, vector<128x64xbf16>, vector<48x64xf32> -> vector<48x64xf32>
    %c1_73 = arith.constant 1 : index
    %c0_74 = arith.constant 0 : index
    %c0_75 = arith.constant 0 : index
    %123 = vector.load %arg15[%c1_73, %c0_74, %c0_75] : memref<4x1x64xf32, #tpu.memory_space<vmem>>, vector<1x1x64xf32>
    %124 = vector.shape_cast %123 : vector<1x1x64xf32> to vector<1x64xf32>
    %125 = vector.broadcast %124 : vector<1x64xf32> to vector<48x64xf32>
    %126 = arith.addf %122, %125 : vector<48x64xf32>
    %cst_76 = arith.constant 0.000000e+00 : f32
    %127 = vector.broadcast %cst_76 : f32 to vector<48x64xf32>
    %128 = arith.maximumf %126, %127 : vector<48x64xf32>
    %c2 = arith.constant 2 : index
    %c0_77 = arith.constant 0 : index
    %c0_78 = arith.constant 0 : index
    %129 = vector.load %arg9[%c2, %c0_77, %c0_78] : memref<4x64x128xbf16, #tpu.memory_space<vmem>>, vector<1x64x128xbf16>
    %130 = vector.shape_cast %129 : vector<1x64x128xbf16> to vector<64x128xbf16>
    %131 = arith.truncf %117 : vector<16x64xf32> to vector<16x64xbf16>
    %cst_79 = arith.constant dense<0.000000e+00> : vector<16x128xf32>
    %132 = tpu.matmul %131, %130, %cst_79 {dimension_numbers = #tpu.dot_dimension_numbers<[1], [0], [0], [1], [0, 0, 1, 1], [], []>} : vector<16x64xbf16>, vector<64x128xbf16>, vector<16x128xf32> -> vector<16x128xf32>
    %133 = vector.extract_strided_slice %132 {offsets = [0, 0], sizes = [16, 64], strides = [1, 1]} : vector<16x128xf32> to vector<16x64xf32>
    %134 = vector.extract_strided_slice %132 {offsets = [0, 64], sizes = [16, 64], strides = [1, 1]} : vector<16x128xf32> to vector<16x64xf32>
    %135 = tpu.concatenate %133, %134 in 0 : vector<16x64xf32>, vector<16x64xf32> -> vector<32x64xf32>
    %136 = arith.truncf %135 : vector<32x64xf32> to vector<32x64xbf16>
    %cst_80 = arith.constant dense<0.000000e+00> : vector<48x64xf32>
    %137 = tpu.matmul %22, %136, %cst_80 {dimension_numbers = #tpu.dot_dimension_numbers<[1], [0], [0], [1], [0, 0, 1, 1], [], []>} : vector<48x32xbf16>, vector<32x64xbf16>, vector<48x64xf32> -> vector<48x64xf32>
    %c2_81 = arith.constant 2 : index
    %c0_82 = arith.constant 0 : index
    %c0_83 = arith.constant 0 : index
    %138 = vector.load %arg10[%c2_81, %c0_82, %c0_83] : memref<4x64x64xbf16, #tpu.memory_space<vmem>>, vector<1x64x64xbf16>
    %139 = vector.shape_cast %138 : vector<1x64x64xbf16> to vector<64x64xbf16>
    %140 = arith.truncf %128 : vector<48x64xf32> to vector<48x64xbf16>
    %cst_84 = arith.constant dense<0.000000e+00> : vector<48x64xf32>
    %141 = tpu.matmul %140, %139, %cst_84 {dimension_numbers = #tpu.dot_dimension_numbers<[1], [0], [0], [1], [0, 0, 1, 1], [], []>} : vector<48x64xbf16>, vector<64x64xbf16>, vector<48x64xf32> -> vector<48x64xf32>
    %142 = arith.addf %137, %141 : vector<48x64xf32>
    %c2_85 = arith.constant 2 : index
    %c0_86 = arith.constant 0 : index
    %c0_87 = arith.constant 0 : index
    %143 = vector.load %arg11[%c2_85, %c0_86, %c0_87] : memref<4x1x64xf32, #tpu.memory_space<vmem>>, vector<1x1x64xf32>
    %144 = vector.shape_cast %143 : vector<1x1x64xf32> to vector<1x64xf32>
    %145 = vector.broadcast %144 : vector<1x64xf32> to vector<48x64xf32>
    %146 = arith.addf %142, %145 : vector<48x64xf32>
    %cst_88 = arith.constant 0.000000e+00 : f32
    %147 = vector.broadcast %cst_88 : f32 to vector<48x64xf32>
    %148 = arith.maximumf %146, %147 : vector<48x64xf32>
    %149 = arith.truncf %148 : vector<48x64xf32> to vector<48x64xbf16>
    %cst_89 = arith.constant dense<0.000000e+00> : vector<16x64xf32>
    %150 = tpu.matmul %8, %149, %cst_89 {dimension_numbers = #tpu.dot_dimension_numbers<[0], [0], [1], [1], [0, 1, 1, 1], [], []>} : vector<48x16xbf16>, vector<48x64xbf16>, vector<16x64xf32> -> vector<16x64xf32>
    %151 = tpu.concatenate %117, %150 in 1 : vector<16x64xf32>, vector<16x64xf32> -> vector<16x128xf32>
    %c2_90 = arith.constant 2 : index
    %c0_91 = arith.constant 0 : index
    %c0_92 = arith.constant 0 : index
    %152 = vector.load %arg12[%c2_90, %c0_91, %c0_92] : memref<4x128x64xbf16, #tpu.memory_space<vmem>>, vector<1x128x64xbf16>
    %153 = vector.shape_cast %152 : vector<1x128x64xbf16> to vector<128x64xbf16>
    %154 = arith.truncf %151 : vector<16x128xf32> to vector<16x128xbf16>
    %cst_93 = arith.constant dense<0.000000e+00> : vector<16x64xf32>
    %155 = tpu.matmul %154, %153, %cst_93 {dimension_numbers = #tpu.dot_dimension_numbers<[1], [0], [0], [1], [0, 0, 1, 1], [], []>} : vector<16x128xbf16>, vector<128x64xbf16>, vector<16x64xf32> -> vector<16x64xf32>
    %c2_94 = arith.constant 2 : index
    %c0_95 = arith.constant 0 : index
    %c0_96 = arith.constant 0 : index
    %156 = vector.load %arg13[%c2_94, %c0_95, %c0_96] : memref<4x1x64xf32, #tpu.memory_space<vmem>>, vector<1x1x64xf32>
    %157 = vector.shape_cast %156 : vector<1x1x64xf32> to vector<1x64xf32>
    %158 = vector.broadcast %157 : vector<1x64xf32> to vector<16x64xf32>
    %159 = arith.addf %155, %158 : vector<16x64xf32>
    %cst_97 = arith.constant 0.000000e+00 : f32
    %160 = vector.broadcast %cst_97 : f32 to vector<16x64xf32>
    %161 = arith.maximumf %159, %160 : vector<16x64xf32>
    %162 = tpu.concatenate %128, %148 in 1 : vector<48x64xf32>, vector<48x64xf32> -> vector<48x128xf32>
    %c2_98 = arith.constant 2 : index
    %c0_99 = arith.constant 0 : index
    %c0_100 = arith.constant 0 : index
    %163 = vector.load %arg14[%c2_98, %c0_99, %c0_100] : memref<4x128x64xbf16, #tpu.memory_space<vmem>>, vector<1x128x64xbf16>
    %164 = vector.shape_cast %163 : vector<1x128x64xbf16> to vector<128x64xbf16>
    %165 = arith.truncf %162 : vector<48x128xf32> to vector<48x128xbf16>
    %cst_101 = arith.constant dense<0.000000e+00> : vector<48x64xf32>
    %166 = tpu.matmul %165, %164, %cst_101 {dimension_numbers = #tpu.dot_dimension_numbers<[1], [0], [0], [1], [0, 0, 1, 1], [], []>} : vector<48x128xbf16>, vector<128x64xbf16>, vector<48x64xf32> -> vector<48x64xf32>
    %c2_102 = arith.constant 2 : index
    %c0_103 = arith.constant 0 : index
    %c0_104 = arith.constant 0 : index
    %167 = vector.load %arg15[%c2_102, %c0_103, %c0_104] : memref<4x1x64xf32, #tpu.memory_space<vmem>>, vector<1x1x64xf32>
    %168 = vector.shape_cast %167 : vector<1x1x64xf32> to vector<1x64xf32>
    %169 = vector.broadcast %168 : vector<1x64xf32> to vector<48x64xf32>
    %170 = arith.addf %166, %169 : vector<48x64xf32>
    %cst_105 = arith.constant 0.000000e+00 : f32
    %171 = vector.broadcast %cst_105 : f32 to vector<48x64xf32>
    %172 = arith.maximumf %170, %171 : vector<48x64xf32>
    %c3 = arith.constant 3 : index
    %c0_106 = arith.constant 0 : index
    %c0_107 = arith.constant 0 : index
    %173 = vector.load %arg9[%c3, %c0_106, %c0_107] : memref<4x64x128xbf16, #tpu.memory_space<vmem>>, vector<1x64x128xbf16>
    %174 = vector.shape_cast %173 : vector<1x64x128xbf16> to vector<64x128xbf16>
    %175 = arith.truncf %161 : vector<16x64xf32> to vector<16x64xbf16>
    %cst_108 = arith.constant dense<0.000000e+00> : vector<16x128xf32>
    %176 = tpu.matmul %175, %174, %cst_108 {dimension_numbers = #tpu.dot_dimension_numbers<[1], [0], [0], [1], [0, 0, 1, 1], [], []>} : vector<16x64xbf16>, vector<64x128xbf16>, vector<16x128xf32> -> vector<16x128xf32>
    %177 = vector.extract_strided_slice %176 {offsets = [0, 0], sizes = [16, 64], strides = [1, 1]} : vector<16x128xf32> to vector<16x64xf32>
    %178 = vector.extract_strided_slice %176 {offsets = [0, 64], sizes = [16, 64], strides = [1, 1]} : vector<16x128xf32> to vector<16x64xf32>
    %179 = tpu.concatenate %177, %178 in 0 : vector<16x64xf32>, vector<16x64xf32> -> vector<32x64xf32>
    %180 = arith.truncf %179 : vector<32x64xf32> to vector<32x64xbf16>
    %cst_109 = arith.constant dense<0.000000e+00> : vector<48x64xf32>
    %181 = tpu.matmul %22, %180, %cst_109 {dimension_numbers = #tpu.dot_dimension_numbers<[1], [0], [0], [1], [0, 0, 1, 1], [], []>} : vector<48x32xbf16>, vector<32x64xbf16>, vector<48x64xf32> -> vector<48x64xf32>
    %c3_110 = arith.constant 3 : index
    %c0_111 = arith.constant 0 : index
    %c0_112 = arith.constant 0 : index
    %182 = vector.load %arg10[%c3_110, %c0_111, %c0_112] : memref<4x64x64xbf16, #tpu.memory_space<vmem>>, vector<1x64x64xbf16>
    %183 = vector.shape_cast %182 : vector<1x64x64xbf16> to vector<64x64xbf16>
    %184 = arith.truncf %172 : vector<48x64xf32> to vector<48x64xbf16>
    %cst_113 = arith.constant dense<0.000000e+00> : vector<48x64xf32>
    %185 = tpu.matmul %184, %183, %cst_113 {dimension_numbers = #tpu.dot_dimension_numbers<[1], [0], [0], [1], [0, 0, 1, 1], [], []>} : vector<48x64xbf16>, vector<64x64xbf16>, vector<48x64xf32> -> vector<48x64xf32>
    %186 = arith.addf %181, %185 : vector<48x64xf32>
    %c3_114 = arith.constant 3 : index
    %c0_115 = arith.constant 0 : index
    %c0_116 = arith.constant 0 : index
    %187 = vector.load %arg11[%c3_114, %c0_115, %c0_116] : memref<4x1x64xf32, #tpu.memory_space<vmem>>, vector<1x1x64xf32>
    %188 = vector.shape_cast %187 : vector<1x1x64xf32> to vector<1x64xf32>
    %189 = vector.broadcast %188 : vector<1x64xf32> to vector<48x64xf32>
    %190 = arith.addf %186, %189 : vector<48x64xf32>
    %cst_117 = arith.constant 0.000000e+00 : f32
    %191 = vector.broadcast %cst_117 : f32 to vector<48x64xf32>
    %192 = arith.maximumf %190, %191 : vector<48x64xf32>
    %193 = arith.truncf %192 : vector<48x64xf32> to vector<48x64xbf16>
    %cst_118 = arith.constant dense<0.000000e+00> : vector<16x64xf32>
    %194 = tpu.matmul %8, %193, %cst_118 {dimension_numbers = #tpu.dot_dimension_numbers<[0], [0], [1], [1], [0, 1, 1, 1], [], []>} : vector<48x16xbf16>, vector<48x64xbf16>, vector<16x64xf32> -> vector<16x64xf32>
    %195 = tpu.concatenate %161, %194 in 1 : vector<16x64xf32>, vector<16x64xf32> -> vector<16x128xf32>
    %c3_119 = arith.constant 3 : index
    %c0_120 = arith.constant 0 : index
    %c0_121 = arith.constant 0 : index
    %196 = vector.load %arg12[%c3_119, %c0_120, %c0_121] : memref<4x128x64xbf16, #tpu.memory_space<vmem>>, vector<1x128x64xbf16>
    %197 = vector.shape_cast %196 : vector<1x128x64xbf16> to vector<128x64xbf16>
    %198 = arith.truncf %195 : vector<16x128xf32> to vector<16x128xbf16>
    %cst_122 = arith.constant dense<0.000000e+00> : vector<16x64xf32>
    %199 = tpu.matmul %198, %197, %cst_122 {dimension_numbers = #tpu.dot_dimension_numbers<[1], [0], [0], [1], [0, 0, 1, 1], [], []>} : vector<16x128xbf16>, vector<128x64xbf16>, vector<16x64xf32> -> vector<16x64xf32>
    %c3_123 = arith.constant 3 : index
    %c0_124 = arith.constant 0 : index
    %c0_125 = arith.constant 0 : index
    %200 = vector.load %arg13[%c3_123, %c0_124, %c0_125] : memref<4x1x64xf32, #tpu.memory_space<vmem>>, vector<1x1x64xf32>
    %201 = vector.shape_cast %200 : vector<1x1x64xf32> to vector<1x64xf32>
    %202 = vector.broadcast %201 : vector<1x64xf32> to vector<16x64xf32>
    %203 = arith.addf %199, %202 : vector<16x64xf32>
    %cst_126 = arith.constant 0.000000e+00 : f32
    %204 = vector.broadcast %cst_126 : f32 to vector<16x64xf32>
    %205 = arith.maximumf %203, %204 : vector<16x64xf32>
    %206 = tpu.concatenate %172, %192 in 1 : vector<48x64xf32>, vector<48x64xf32> -> vector<48x128xf32>
    %c3_127 = arith.constant 3 : index
    %c0_128 = arith.constant 0 : index
    %c0_129 = arith.constant 0 : index
    %207 = vector.load %arg14[%c3_127, %c0_128, %c0_129] : memref<4x128x64xbf16, #tpu.memory_space<vmem>>, vector<1x128x64xbf16>
    %208 = vector.shape_cast %207 : vector<1x128x64xbf16> to vector<128x64xbf16>
    %209 = arith.truncf %206 : vector<48x128xf32> to vector<48x128xbf16>
    %cst_130 = arith.constant dense<0.000000e+00> : vector<48x64xf32>
    %210 = tpu.matmul %209, %208, %cst_130 {dimension_numbers = #tpu.dot_dimension_numbers<[1], [0], [0], [1], [0, 0, 1, 1], [], []>} : vector<48x128xbf16>, vector<128x64xbf16>, vector<48x64xf32> -> vector<48x64xf32>
    %c3_131 = arith.constant 3 : index
    %c0_132 = arith.constant 0 : index
    %c0_133 = arith.constant 0 : index
    %211 = vector.load %arg15[%c3_131, %c0_132, %c0_133] : memref<4x1x64xf32, #tpu.memory_space<vmem>>, vector<1x1x64xf32>
    %212 = vector.shape_cast %211 : vector<1x1x64xf32> to vector<1x64xf32>
    %213 = vector.broadcast %212 : vector<1x64xf32> to vector<48x64xf32>
    %214 = arith.addf %210, %213 : vector<48x64xf32>
    %cst_134 = arith.constant 0.000000e+00 : f32
    %215 = vector.broadcast %cst_134 : f32 to vector<48x64xf32>
    %216 = arith.maximumf %214, %215 : vector<48x64xf32>
    %c0_135 = arith.constant 0 : index
    %c0_136 = arith.constant 0 : index
    %217 = vector.load %arg16[%c0_135, %c0_136] : memref<1x64xf32, #tpu.memory_space<vmem>>, vector<1x64xf32>
    %218 = vector.broadcast %217 : vector<1x64xf32> to vector<16x64xf32>
    %219 = arith.mulf %205, %218 : vector<16x64xf32>
    %cst_137 = arith.constant dense<0.000000e+00> : vector<16xf32>
    %220 = vector.multi_reduction <add>, %219, %cst_137 [1] : vector<16x64xf32> to vector<16xf32>
    %221 = vector.shape_cast %220 : vector<16xf32> to vector<16x1xf32>
    %c0_138 = arith.constant 0 : index
    %c0_139 = arith.constant 0 : index
    %222 = vector.load %arg17[%c0_138, %c0_139] : memref<1x1xf32, #tpu.memory_space<vmem>>, vector<1x1xf32>
    %223 = vector.broadcast %222 : vector<1x1xf32> to vector<16x1xf32>
    %224 = arith.addf %221, %223 : vector<16x1xf32>
    %c0_140 = arith.constant 0 : index
    %c0_141 = arith.constant 0 : index
    %225 = vector.load %arg20[%c0_140, %c0_141] : memref<16x1xf32, #tpu.memory_space<vmem>>, vector<16x1xf32>
    tpu.vector_store %arg20[%c0_140, %c0_141], %224 {strides = array<i32>} : memref<16x1xf32, #tpu.memory_space<vmem>>, vector<16x1xf32>,
    %c0_142 = arith.constant 0 : index
    %c0_143 = arith.constant 0 : index
    %226 = vector.load %arg18[%c0_142, %c0_143] : memref<1x64xf32, #tpu.memory_space<vmem>>, vector<1x64xf32>
    %227 = vector.broadcast %226 : vector<1x64xf32> to vector<48x64xf32>
    %228 = arith.mulf %216, %227 : vector<48x64xf32>
    %cst_144 = arith.constant dense<0.000000e+00> : vector<48xf32>
    %229 = vector.multi_reduction <add>, %228, %cst_144 [1] : vector<48x64xf32> to vector<48xf32>
    %230 = vector.shape_cast %229 : vector<48xf32> to vector<48x1xf32>
    %c0_145 = arith.constant 0 : index
    %c0_146 = arith.constant 0 : index
    %231 = vector.load %arg19[%c0_145, %c0_146] : memref<1x1xf32, #tpu.memory_space<vmem>>, vector<1x1xf32>
    %232 = vector.broadcast %231 : vector<1x1xf32> to vector<48x1xf32>
    %233 = arith.addf %230, %232 : vector<48x1xf32>
    %c0_147 = arith.constant 0 : index
    %c0_148 = arith.constant 0 : index
    %234 = vector.load %arg21[%c0_147, %c0_148] : memref<48x1xf32, #tpu.memory_space<vmem>>, vector<48x1xf32>
    tpu.vector_store %arg21[%c0_147, %c0_148], %233 {strides = array<i32>} : memref<48x1xf32, #tpu.memory_space<vmem>>, vector<48x1xf32>,
    return
  }
  func.func @transform_0(%arg0: i32) -> (i32, i32) {
    %c0_i32 = arith.constant 0 : i32
    %c0_i32_0 = arith.constant 0 : i32
    %c0_i32_1 = arith.constant 0 : i32
    return %c0_i32, %c0_i32_0 : i32, i32
  }
  func.func @transform_1(%arg0: i32) -> (i32, i32) {
    %c0_i32 = arith.constant 0 : i32
    %c0_i32_0 = arith.constant 0 : i32
    %c0_i32_1 = arith.constant 0 : i32
    return %c0_i32, %c0_i32_0 : i32, i32
  }
  func.func @transform_2(%arg0: i32) -> (i32, i32) {
    %c0_i32 = arith.constant 0 : i32
    %c0_i32_0 = arith.constant 0 : i32
    %c0_i32_1 = arith.constant 0 : i32
    return %c0_i32, %c0_i32_0 : i32, i32
  }
  func.func @transform_3(%arg0: i32) -> (i32, i32) {
    %c0_i32 = arith.constant 0 : i32
    %c0_i32_0 = arith.constant 0 : i32
    %c0_i32_1 = arith.constant 0 : i32
    return %c0_i32, %c0_i32_0 : i32, i32
  }
  func.func @transform_4(%arg0: i32) -> (i32, i32) {
    %c0_i32 = arith.constant 0 : i32
    %c0_i32_0 = arith.constant 0 : i32
    %c0_i32_1 = arith.constant 0 : i32
    return %c0_i32, %c0_i32_0 : i32, i32
  }
  func.func @transform_5(%arg0: i32) -> (i32, i32) {
    %c0_i32 = arith.constant 0 : i32
    %c0_i32_0 = arith.constant 0 : i32
    %c0_i32_1 = arith.constant 0 : i32
    return %c0_i32, %c0_i32_0 : i32, i32
  }
  func.func @transform_6(%arg0: i32) -> (i32, i32) {
    %c0_i32 = arith.constant 0 : i32
    %c0_i32_0 = arith.constant 0 : i32
    %c0_i32_1 = arith.constant 0 : i32
    return %c0_i32, %c0_i32_0 : i32, i32
  }
  func.func @transform_7(%arg0: i32) -> (i32, i32) {
    %c0_i32 = arith.constant 0 : i32
    %c0_i32_0 = arith.constant 0 : i32
    %c0_i32_1 = arith.constant 0 : i32
    return %c0_i32, %c0_i32_0 : i32, i32
  }
  func.func @transform_8(%arg0: i32) -> (i32, i32, i32) {
    %c0_i32 = arith.constant 0 : i32
    %c0_i32_0 = arith.constant 0 : i32
    %c0_i32_1 = arith.constant 0 : i32
    %c0_i32_2 = arith.constant 0 : i32
    return %c0_i32, %c0_i32_0, %c0_i32_1 : i32, i32, i32
  }
  func.func @transform_9(%arg0: i32) -> (i32, i32, i32) {
    %c0_i32 = arith.constant 0 : i32
    %c0_i32_0 = arith.constant 0 : i32
    %c0_i32_1 = arith.constant 0 : i32
    %c0_i32_2 = arith.constant 0 : i32
    return %c0_i32, %c0_i32_0, %c0_i32_1 : i32, i32, i32
  }
  func.func @transform_10(%arg0: i32) -> (i32, i32, i32) {
    %c0_i32 = arith.constant 0 : i32
    %c0_i32_0 = arith.constant 0 : i32
    %c0_i32_1 = arith.constant 0 : i32
    %c0_i32_2 = arith.constant 0 : i32
    return %c0_i32, %c0_i32_0, %c0_i32_1 : i32, i32, i32
  }
  func.func @transform_11(%arg0: i32) -> (i32, i32, i32) {
    %c0_i32 = arith.constant 0 : i32
    %c0_i32_0 = arith.constant 0 : i32
    %c0_i32_1 = arith.constant 0 : i32
    %c0_i32_2 = arith.constant 0 : i32
    return %c0_i32, %c0_i32_0, %c0_i32_1 : i32, i32, i32
  }
  func.func @transform_12(%arg0: i32) -> (i32, i32, i32) {
    %c0_i32 = arith.constant 0 : i32
    %c0_i32_0 = arith.constant 0 : i32
    %c0_i32_1 = arith.constant 0 : i32
    %c0_i32_2 = arith.constant 0 : i32
    return %c0_i32, %c0_i32_0, %c0_i32_1 : i32, i32, i32
  }
  func.func @transform_13(%arg0: i32) -> (i32, i32, i32) {
    %c0_i32 = arith.constant 0 : i32
    %c0_i32_0 = arith.constant 0 : i32
    %c0_i32_1 = arith.constant 0 : i32
    %c0_i32_2 = arith.constant 0 : i32
    return %c0_i32, %c0_i32_0, %c0_i32_1 : i32, i32, i32
  }
  func.func @transform_14(%arg0: i32) -> (i32, i32, i32) {
    %c0_i32 = arith.constant 0 : i32
    %c0_i32_0 = arith.constant 0 : i32
    %c0_i32_1 = arith.constant 0 : i32
    %c0_i32_2 = arith.constant 0 : i32
    return %c0_i32, %c0_i32_0, %c0_i32_1 : i32, i32, i32
  }
  func.func @transform_15(%arg0: i32) -> (i32, i32) {
    %c0_i32 = arith.constant 0 : i32
    %c0_i32_0 = arith.constant 0 : i32
    %c0_i32_1 = arith.constant 0 : i32
    return %c0_i32, %c0_i32_0 : i32, i32
  }
  func.func @transform_16(%arg0: i32) -> (i32, i32) {
    %c0_i32 = arith.constant 0 : i32
    %c0_i32_0 = arith.constant 0 : i32
    %c0_i32_1 = arith.constant 0 : i32
    return %c0_i32, %c0_i32_0 : i32, i32
  }
  func.func @transform_17(%arg0: i32) -> (i32, i32) {
    %c0_i32 = arith.constant 0 : i32
    %c0_i32_0 = arith.constant 0 : i32
    %c0_i32_1 = arith.constant 0 : i32
    return %c0_i32, %c0_i32_0 : i32, i32
  }
  func.func @transform_18(%arg0: i32) -> (i32, i32) {
    %c0_i32 = arith.constant 0 : i32
    %c0_i32_0 = arith.constant 0 : i32
    %c0_i32_1 = arith.constant 0 : i32
    return %c0_i32, %c0_i32_0 : i32, i32
  }
  func.func @transform_19(%arg0: i32) -> (i32, i32) {
    %c0_i32 = arith.constant 0 : i32
    %c0_i32_0 = arith.constant 0 : i32
    %c0_i32_1 = arith.constant 0 : i32
    return %c0_i32, %c0_i32_0 : i32, i32
  }
  func.func @transform_20(%arg0: i32) -> (i32, i32) {
    %c0_i32 = arith.constant 0 : i32
    %c0_i32_0 = arith.constant 0 : i32
    %c0_i32_1 = arith.constant 0 : i32
    return %c0_i32, %c0_i32_0 : i32, i32
  }
}

</mosaic_0001>

<llo_original>
// kernel: run.1
$region0: #{run.1}
  #allocation0 [shape = 'u32[]', space=smem, size = 0x4, offset = 0x4, fixed_abs, tag = 'smem constant byte address 0x4 - core index']
  #allocation1 [shape = 'u32[72,128]{1,0:T(1,128)}', space=vmem, size = 0x9000, scoped, tag = 'internal scratch']
  #allocation2 [shape = 'f32[1,1]{1,0:T(1,128)S(1)}', space=vmem, size = 0x200, scoped, tag = 'scoped memory for run.1']
  #allocation3 [shape = 'f32[1,1]{1,0:T(1,128)S(1)}', space=vmem, size = 0x200, scoped, tag = 'scoped memory for run.1']
  %s0 = inlined_call_operand.vmem [shape: f32[16,16], index: 0, kind: input, shape index: {}]
  %s1 = inlined_call_operand.vmem [shape: f32[48,16], index: 1, kind: input, shape index: {}]
  %s2 = inlined_call_operand.vmem [shape: s32[48,1], index: 2, kind: input, shape index: {}]
  %s3 = inlined_call_operand.vmem [shape: s32[48,1], index: 3, kind: input, shape index: {}]
  %s4 = inlined_call_operand.vmem [shape: bf16[16,64], index: 4, kind: input, shape index: {}]
  %s5 = inlined_call_operand.vmem [shape: f32[1,64], index: 5, kind: input, shape index: {}]
  %s6 = inlined_call_operand.vmem [shape: bf16[16,64], index: 6, kind: input, shape index: {}]
  %s7 = inlined_call_operand.vmem [shape: f32[1,64], index: 7, kind: input, shape index: {}]
  %s8 = inlined_call_operand.vmem [shape: bf16[4,64,128], index: 8, kind: input, shape index: {}]
  %s9 = inlined_call_operand.vmem [shape: bf16[4,64,64], index: 9, kind: input, shape index: {}]
  %s10 = inlined_call_operand.vmem [shape: f32[4,1,64], index: 10, kind: input, shape index: {}]
  %s11 = inlined_call_operand.vmem [shape: bf16[4,128,64], index: 11, kind: input, shape index: {}]
  %s12 = inlined_call_operand.vmem [shape: f32[4,1,64], index: 12, kind: input, shape index: {}]
  %s13 = inlined_call_operand.vmem [shape: bf16[4,128,64], index: 13, kind: input, shape index: {}]
  %s14 = inlined_call_operand.vmem [shape: f32[4,1,64], index: 14, kind: input, shape index: {}]
  %s15 = inlined_call_operand.vmem [shape: f32[1,64], index: 15, kind: input, shape index: {}]
  %s16 = inlined_call_operand.<no memory space> [shape: f32[1,1], index: 16, kind: input, shape index: {}]
  %s17 = inlined_call_operand.vmem [shape: f32[1,64], index: 17, kind: input, shape index: {}]
  %s18 = inlined_call_operand.<no memory space> [shape: f32[1,1], index: 18, kind: input, shape index: {}]
  %s19 = inlined_call_operand.vmem [shape: f32[16,1], index: 19, kind: output, shape index: {0}]
  %s20 = inlined_call_operand.vmem [shape: f32[48,1], index: 20, kind: output, shape index: {1}]
  %21 = xla_tuple %s19, %s20
  %s22 = sld [smem:[#allocation0]]
  $region94: #{run.1} parent=0
    _
  %s24 = ssub.s32 1, %s22
  %s25 = scalar_select 0, %s24, %s22
  %v26 = vstv %s16
  %27 = vst [vmem:[#allocation2] sm:$0x1] %v26
  %v28 = vstv %s18
  %29 = vst [vmem:[#allocation3] sm:$0x1] %v28
  // Predicated region
  $region2: #{run.1} parent=0 // pred_check
    _
  $region3: #{run.1} parent=0 // pred_check_branch
    %31 = sbr.rel (0) target = $region5
  $region4: #{run.1} parent=0 // pred_region
    _
  $region5: #{run.1} parent=0 // pred_fallthru
    _
  // Predicated region
  $region6: #{run.1} parent=0 // pred_check
    _
  $region7: #{run.1} parent=0 // pred_check_branch
    %33 = sbr.rel (0) target = $region9
  $region8: #{run.1} parent=0 // pred_region
    _
  $region9: #{run.1} parent=0 // pred_fallthru
    _
  // Predicated region
  $region10: #{run.1} parent=0 // pred_check
    _
  $region11: #{run.1} parent=0 // pred_check_branch
    %35 = sbr.rel (0) target = $region13
  $region12: #{run.1} parent=0 // pred_region
    _
  $region13: #{run.1} parent=0 // pred_fallthru
    _
  // Predicated region
  $region14: #{run.1} parent=0 // pred_check
    _
  $region15: #{run.1} parent=0 // pred_check_branch
    %37 = sbr.rel (0) target = $region17
  $region16: #{run.1} parent=0 // pred_region
    _
  $region17: #{run.1} parent=0 // pred_fallthru
    _
  // Predicated region
  $region18: #{run.1} parent=0 // pred_check
    _
  $region19: #{run.1} parent=0 // pred_check_branch
    %39 = sbr.rel (0) target = $region21
  $region20: #{run.1} parent=0 // pred_region
    _
  $region21: #{run.1} parent=0 // pred_fallthru
    _
  // Predicated region
  $region22: #{run.1} parent=0 // pred_check
    _
  $region23: #{run.1} parent=0 // pred_check_branch
    %41 = sbr.rel (0) target = $region25
  $region24: #{run.1} parent=0 // pred_region
    _
  $region25: #{run.1} parent=0 // pred_fallthru
    _
  // Predicated region
  $region26: #{run.1} parent=0 // pred_check
    _
  $region27: #{run.1} parent=0 // pred_check_branch
    %43 = sbr.rel (0) target = $region29
  $region28: #{run.1} parent=0 // pred_region
    _
  $region29: #{run.1} parent=0 // pred_fallthru
    _
  // Predicated region
  $region30: #{run.1} parent=0 // pred_check
    _
  $region31: #{run.1} parent=0 // pred_check_branch
    %45 = sbr.rel (0) target = $region33
  $region32: #{run.1} parent=0 // pred_region
    _
  $region33: #{run.1} parent=0 // pred_fallthru
    _
  // Predicated region
  $region34: #{run.1} parent=0 // pred_check
    _
  $region35: #{run.1} parent=0 // pred_check_branch
    %47 = sbr.rel (0) target = $region37
  $region36: #{run.1} parent=0 // pred_region
    _
  $region37: #{run.1} parent=0 // pred_fallthru
    _
  // Predicated region
  $region38: #{run.1} parent=0 // pred_check
    _
  $region39: #{run.1} parent=0 // pred_check_branch
    %49 = sbr.rel (0) target = $region41
  $region40: #{run.1} parent=0 // pred_region
    _
  $region41: #{run.1} parent=0 // pred_fallthru
    _
  // Predicated region
  $region42: #{run.1} parent=0 // pred_check
    _
  $region43: #{run.1} parent=0 // pred_check_branch
    %51 = sbr.rel (0) target = $region45
  $region44: #{run.1} parent=0 // pred_region
    _
  $region45: #{run.1} parent=0 // pred_fallthru
    _
  // Predicated region
  $region46: #{run.1} parent=0 // pred_check
    _
  $region47: #{run.1} parent=0 // pred_check_branch
    %53 = sbr.rel (0) target = $region49
  $region48: #{run.1} parent=0 // pred_region
    _
  $region49: #{run.1} parent=0 // pred_fallthru
    _
  // Predicated region
  $region50: #{run.1} parent=0 // pred_check
    _
  $region51: #{run.1} parent=0 // pred_check_branch
    %55 = sbr.rel (0) target = $region53
  $region52: #{run.1} parent=0 // pred_region
    _
  $region53: #{run.1} parent=0 // pred_fallthru
    _
  // Predicated region
  $region54: #{run.1} parent=0 // pred_check
    _
  $region55: #{run.1} parent=0 // pred_check_branch
    %57 = sbr.rel (0) target = $region57
  $region56: #{run.1} parent=0 // pred_region
    _
  $region57: #{run.1} parent=0 // pred_fallthru
    _
  // Predicated region
  $region58: #{run.1} parent=0 // pred_check
    _
  $region59: #{run.1} parent=0 // pred_check_branch
    %59 = sbr.rel (0) target = $region61
  $region60: #{run.1} parent=0 // pred_region
    _
  $region61: #{run.1} parent=0 // pred_fallthru
    _
  // Predicated region
  $region62: #{run.1} parent=0 // pred_check
    _
  $region63: #{run.1} parent=0 // pred_check_branch
    %61 = sbr.rel (0) target = $region65
  $region64: #{run.1} parent=0 // pred_region
    _
  $region65: #{run.1} parent=0 // pred_fallthru
    _
  // Predicated region
  $region66: #{run.1} parent=0 // pred_check
    _
  $region67: #{run.1} parent=0 // pred_check_branch
    %63 = sbr.rel (0) target = $region69
  $region68: #{run.1} parent=0 // pred_region
    _
  $region69: #{run.1} parent=0 // pred_fallthru
    _
  // Predicated region
  $region70: #{run.1} parent=0 // pred_check
    _
  $region71: #{run.1} parent=0 // pred_check_branch
    %65 = sbr.rel (0) target = $region73
  $region72: #{run.1} parent=0 // pred_region
    _
  $region73: #{run.1} parent=0 // pred_fallthru
    _
  // Predicated region
  $region74: #{run.1} parent=0 // pred_check
    _
  $region75: #{run.1} parent=0 // pred_check_branch
    %67 = sbr.rel (0) target = $region77
  $region76: #{run.1} parent=0 // pred_region
    _
  $region77: #{run.1} parent=0 // pred_fallthru
    _
  %v69 = vld [vmem:[%s2] sm:$0xff]
  %v70 = vld [vmem:[%s2 + $0x8] sm:$0xff]
  %v71 = vld [vmem:[%s2 + $0x10] sm:$0xff]
  %v72 = vld [vmem:[%s2 + $0x18] sm:$0xff]
  %v73 = vld [vmem:[%s2 + $0x20] sm:$0xff]
  %v74 = vld [vmem:[%s2 + $0x28] sm:$0xff]
  %v75 = vld [vmem:[%s3] sm:$0xff]
  %v76 = vld [vmem:[%s3 + $0x8] sm:$0xff]
  %v77 = vld [vmem:[%s3 + $0x10] sm:$0xff]
  %v78 = vld [vmem:[%s3 + $0x18] sm:$0xff]
  %v79 = vld [vmem:[%s3 + $0x20] sm:$0xff]
  %v80 = vld [vmem:[%s3 + $0x28] sm:$0xff]
  %v81 = vlaneseq
  %v82 = vand.u32 %v81, 127
  %83 = vset.pattern.permute.xlu0 0
  %84 = vperm.xlu0 %83, %v75
  %v85 = vpop.permute.xlu0 %84
  %86 = vset.pattern.permute.xlu0 0
  %87 = vperm.xlu0 %86, %v76
  %v88 = vpop.permute.xlu0 %87
  %89 = vset.pattern.permute.xlu0 0
  %90 = vperm.xlu0 %89, %v77
  %v91 = vpop.permute.xlu0 %90
  %92 = vset.pattern.permute.xlu0 0
  %93 = vperm.xlu0 %92, %v78
  %v94 = vpop.permute.xlu0 %93
  %95 = vset.pattern.permute.xlu0 0
  %96 = vperm.xlu0 %95, %v79
  %v97 = vpop.permute.xlu0 %96
  %98 = vset.pattern.permute.xlu0 0
  %99 = vperm.xlu0 %98, %v80
  %v100 = vpop.permute.xlu0 %99
  %vm101 = vcmp.eq.s32.totalorder %v85, %v82
  %vm102 = vcmp.eq.s32.totalorder %v88, %v82
  %vm103 = vcmp.eq.s32.totalorder %v91, %v82
  %vm104 = vcmp.eq.s32.totalorder %v94, %v82
  %vm105 = vcmp.eq.s32.totalorder %v97, %v82
  %vm106 = vcmp.eq.s32.totalorder %v100, %v82
  %v107 = vsel %vm101, 1, 0
  %v108 = vsel %vm102, 1, 0
  %v109 = vsel %vm103, 1, 0
  %v110 = vsel %vm104, 1, 0
  %v111 = vsel %vm105, 1, 0
  %v112 = vsel %vm106, 1, 0
  %v113 = vcvt.s32.f32 %v107
  %v114 = vcvt.s32.f32 %v108
  %v115 = vcvt.s32.f32 %v109
  %v116 = vcvt.s32.f32 %v110
  %v117 = vcvt.s32.f32 %v111
  %v118 = vcvt.s32.f32 %v112
  %v119 = vpack.c.bf16 %v114, %v113
  %v120 = vpack.c.bf16 %v116, %v115
  %v121 = vpack.c.bf16 %v118, %v117
  %vm122 = vcmp.ge.s32.totalorder %v75, 0
  %vm123 = vcmp.ge.s32.totalorder %v76, 0
  %vm124 = vcmp.ge.s32.totalorder %v77, 0
  %vm125 = vcmp.ge.s32.totalorder %v78, 0
  %vm126 = vcmp.ge.s32.totalorder %v79, 0
  %vm127 = vcmp.ge.s32.totalorder %v80, 0
  %v128 = vadd.s32 %v75, 16
  %v129 = vadd.s32 %v76, 16
  %v130 = vadd.s32 %v77, 16
  %v131 = vadd.s32 %v78, 16
  %v132 = vadd.s32 %v79, 16
  %v133 = vadd.s32 %v80, 16
  %v134 = vsel %vm122, %v128, 4294967295
  %v135 = vsel %vm123, %v129, 4294967295
  %v136 = vsel %vm124, %v130, 4294967295
  %v137 = vsel %vm125, %v131, 4294967295
  %v138 = vsel %vm126, %v132, 4294967295
  %v139 = vsel %vm127, %v133, 4294967295
  %140 = vset.pattern.permute.xlu0 0
  %141 = vperm.xlu0 %140, %v69
  %v142 = vpop.permute.xlu0 %141
  %143 = vset.pattern.permute.xlu0 0
  %144 = vperm.xlu0 %143, %v70
  %v145 = vpop.permute.xlu0 %144
  %146 = vset.pattern.permute.xlu0 0
  %147 = vperm.xlu0 %146, %v71
  %v148 = vpop.permute.xlu0 %147
  %149 = vset.pattern.permute.xlu0 0
  %150 = vperm.xlu0 %149, %v72
  %v151 = vpop.permute.xlu0 %150
  %152 = vset.pattern.permute.xlu0 0
  %153 = vperm.xlu0 %152, %v73
  %v154 = vpop.permute.xlu0 %153
  %155 = vset.pattern.permute.xlu0 0
  %156 = vperm.xlu0 %155, %v74
  %v157 = vpop.permute.xlu0 %156
  %vm158 = vcmp.eq.s32.totalorder %v82, %v142
  %vm159 = vcmp.eq.s32.totalorder %v82, %v145
  %vm160 = vcmp.eq.s32.totalorder %v82, %v148
  %vm161 = vcmp.eq.s32.totalorder %v82, %v151
  %vm162 = vcmp.eq.s32.totalorder %v82, %v154
  %vm163 = vcmp.eq.s32.totalorder %v82, %v157
  %164 = vset.pattern.permute.xlu0 0
  %165 = vperm.xlu0 %164, %v134
  %v166 = vpop.permute.xlu0 %165
  %167 = vset.pattern.permute.xlu0 0
  %168 = vperm.xlu0 %167, %v135
  %v169 = vpop.permute.xlu0 %168
  %170 = vset.pattern.permute.xlu0 0
  %171 = vperm.xlu0 %170, %v136
  %v172 = vpop.permute.xlu0 %171
  %173 = vset.pattern.permute.xlu0 0
  %174 = vperm.xlu0 %173, %v137
  %v175 = vpop.permute.xlu0 %174
  %176 = vset.pattern.permute.xlu0 0
  %177 = vperm.xlu0 %176, %v138
  %v178 = vpop.permute.xlu0 %177
  %179 = vset.pattern.permute.xlu0 0
  %180 = vperm.xlu0 %179, %v139
  %v181 = vpop.permute.xlu0 %180
  %vm182 = vcmp.eq.s32.totalorder %v82, %v166
  %vm183 = vcmp.eq.s32.totalorder %v82, %v169
  %vm184 = vcmp.eq.s32.totalorder %v82, %v172
  %vm185 = vcmp.eq.s32.totalorder %v82, %v175
  %vm186 = vcmp.eq.s32.totalorder %v82, %v178
  %vm187 = vcmp.eq.s32.totalorder %v82, %v181
  %vm188 = vmor %vm158, %vm182
  %vm189 = vmor %vm159, %vm183
  %vm190 = vmor %vm160, %vm184
  %vm191 = vmor %vm161, %vm185
  %vm192 = vmor %vm162, %vm186
  %vm193 = vmor %vm163, %vm187
  %v194 = vsel %vm188, 1, 0
  %v195 = vsel %vm189, 1, 0
  %v196 = vsel %vm190, 1, 0
  %v197 = vsel %vm191, 1, 0
  %v198 = vsel %vm192, 1, 0
  %v199 = vsel %vm193, 1, 0
  %v200 = vcvt.s32.f32 %v194
  %v201 = vcvt.s32.f32 %v195
  %v202 = vcvt.s32.f32 %v196
  %v203 = vcvt.s32.f32 %v197
  %v204 = vcvt.s32.f32 %v198
  %v205 = vcvt.s32.f32 %v199
  %v206 = vpack.c.bf16 %v201, %v200
  %v207 = vpack.c.bf16 %v203, %v202
  %v208 = vpack.c.bf16 %v205, %v204
  %v209 = vld [vmem:[%s0] sm:$0xff]
  %v210 = vld [vmem:[%s0 + $0x8] sm:$0xff]
  %v211 = vld [vmem:[%s4] sm:$0xf]
  %v212 = vld [vmem:[%s4 + $0x4] sm:$0xf]
  %v213 = vpack.c.bf16 %v210, %v209
  %v214 = vld [vmem:[%s5] sm:$0x1]
  %v216 = vperm.slane %v214, 0
  %v220 = vunpack.c.l.b16 %v211
  %v221 = vunpack.c.l.b16 %v212
  %v222 = vpack.c.b16 %v221, %v220
  %vm224 = vcmask 130048
  %v226 = vsel %vm224, %v213, 0
  %228 = vmatpush.bf16.msra.mxu0 0
  %229 = vmatpush.bf16.msra.mxu0 0
  %230 = vmatpush.bf16.msra.mxu0 0
  %231 = vmatpush.bf16.msra.mxu0 0
  %232 = vmatpush.bf16.msra.mxu0 0
  %233 = vmatpush.bf16.msra.mxu0 0
  %234 = vmatpush.bf16.msra.mxu0 0
  %235 = vmatpush.bf16.msra.mxu0 %v222
  %236 = vmatmul.bf16.gmra.mxu0 %v226
  %v237 = vpop.f32.mrf.mxu0
  %v238 = vadd.f32 %v216, %v237
  %v239 = vpop.f32.mrf.mxu0
  %v240 = vadd.f32 %v216, %v239
  %241 = vdwg.mxu0
  %v242 = vmax.f32 %v238, 0.0
  %v243 = vmax.f32 %v240, 0.0
  %v244 = vld [vmem:[%s1] sm:$0xff]
  %v245 = vld [vmem:[%s1 + $0x8] sm:$0xff]
  %v246 = vld [vmem:[%s1 + $0x10] sm:$0xff]
  %v247 = vld [vmem:[%s1 + $0x18] sm:$0xff]
  %v248 = vld [vmem:[%s1 + $0x20] sm:$0xff]
  %v249 = vld [vmem:[%s1 + $0x28] sm:$0xff]
  %v250 = vld [vmem:[%s6] sm:$0xf]
  %v251 = vld [vmem:[%s6 + $0x4] sm:$0xf]
  %v252 = vpack.c.bf16 %v245, %v244
  %v253 = vpack.c.bf16 %v247, %v246
  %v254 = vpack.c.bf16 %v249, %v248
  %v255 = vld [vmem:[%s7] sm:$0x1]
  %v257 = vperm.slane %v255, 0
  %v261 = vunpack.c.l.b16 %v250
  %v262 = vunpack.c.l.b16 %v251
  %v263 = vpack.c.b16 %v262, %v261
  %v266 = vsel %vm224, %v252, 0
  %v269 = vsel %vm224, %v253, 0
  %v272 = vsel %vm224, %v254, 0
  %274 = vmatpush.bf16.msra.mxu0 0
  %275 = vmatpush.bf16.msra.mxu0 0
  %276 = vmatpush.bf16.msra.mxu0 0
  %277 = vmatpush.bf16.msra.mxu0 0
  %278 = vmatpush.bf16.msra.mxu0 0
  %279 = vmatpush.bf16.msra.mxu0 0
  %280 = vmatpush.bf16.msra.mxu0 0
  %281 = vmatpush.bf16.msra.mxu0 %v263
  %282 = vmatmul.bf16.gmra.mxu0 %v266
  %v283 = vpop.f32.mrf.mxu0
  %v284 = vadd.f32 %v257, %v283
  %v285 = vpop.f32.mrf.mxu0
  %v286 = vadd.f32 %v257, %v285
  %287 = vmatmul.bf16.gmra.mxu0 %v269
  %v288 = vpop.f32.mrf.mxu0
  %v289 = vadd.f32 %v257, %v288
  %v290 = vpop.f32.mrf.mxu0
  %v291 = vadd.f32 %v257, %v290
  %292 = vmatmul.bf16.gmra.mxu0 %v272
  %v293 = vpop.f32.mrf.mxu0
  %v294 = vadd.f32 %v257, %v293
  %v295 = vpop.f32.mrf.mxu0
  %v296 = vadd.f32 %v257, %v295
  %297 = vdwg.mxu0
  %v298 = vmax.f32 %v284, 0.0
  %v299 = vmax.f32 %v286, 0.0
  %v300 = vmax.f32 %v289, 0.0
  %v301 = vmax.f32 %v291, 0.0
  %v302 = vmax.f32 %v294, 0.0
  %v303 = vmax.f32 %v296, 0.0
  %v304 = vld [vmem:[%s8] sm:$0xf]
  %v305 = vld [vmem:[%s8 + $0x4] sm:$0xf]
  %v306 = vld [vmem:[%s8 + $0x8] sm:$0xf]
  %v307 = vld [vmem:[%s8 + $0xc] sm:$0xf]
  %v308 = vld [vmem:[%s8 + $0x10] sm:$0xf]
  %v309 = vld [vmem:[%s8 + $0x14] sm:$0xf]
  %v310 = vld [vmem:[%s8 + $0x18] sm:$0xf]
  %v311 = vld [vmem:[%s8 + $0x1c] sm:$0xf]
  %v312 = vpack.c.bf16 %v243, %v242
  %v321 = vunpack.c.l.b16 %v304
  %v322 = vunpack.c.l.b16 %v305
  %v323 = vunpack.c.l.b16 %v306
  %v324 = vunpack.c.l.b16 %v307
  %v325 = vunpack.c.l.b16 %v308
  %v326 = vunpack.c.l.b16 %v309
  %v327 = vunpack.c.l.b16 %v310
  %v328 = vunpack.c.l.b16 %v311
  %v329 = vpack.c.b16 %v322, %v321
  %v330 = vpack.c.b16 %v324, %v323
  %v331 = vpack.c.b16 %v326, %v325
  %v332 = vpack.c.b16 %v328, %v327
  %vm337 = vcmask 523264
  %v339 = vsel %vm337, %v312, 0
  %341 = vmatpush.bf16.msra.mxu0 0
  %342 = vmatpush.bf16.msra.mxu0 0
  %343 = vmatpush.bf16.msra.mxu0 0
  %344 = vmatpush.bf16.msra.mxu0 0
  %345 = vmatpush.bf16.msra.mxu0 %v332
  %346 = vmatpush.bf16.msra.mxu0 %v331
  %347 = vmatpush.bf16.msra.mxu0 %v330
  %348 = vmatpush.bf16.msra.mxu0 %v329
  %349 = vmatmul.bf16.gmra.mxu0 %v339
  %v350 = vpop.f32.mrf.mxu0
  %v351 = vadd.f32 0.0, %v350
  %v352 = vpop.f32.mrf.mxu0
  %v353 = vadd.f32 0.0, %v352
  %354 = vdwg.mxu0
  %357 = vrot.lane.b32.xlu0 %v351, 64
  %v358 = vpop.permute.xlu0 %357
  %359 = vrot.lane.b32.xlu0 %v353, 64
  %v360 = vpop.permute.xlu0 %359
  %v363 = vpack.c.bf16 %v353, %v351
  %v364 = vpack.c.bf16 %v360, %v358
  %v365 = vld [vmem:[%s9] sm:$0xf]
  %v366 = vld [vmem:[%s9 + $0x4] sm:$0xf]
  %v367 = vld [vmem:[%s9 + $0x8] sm:$0xf]
  %v368 = vld [vmem:[%s9 + $0xc] sm:$0xf]
  %v369 = vld [vmem:[%s9 + $0x10] sm:$0xf]
  %v370 = vld [vmem:[%s9 + $0x14] sm:$0xf]
  %v371 = vld [vmem:[%s9 + $0x18] sm:$0xf]
  %v372 = vld [vmem:[%s9 + $0x1c] sm:$0xf]
  %v373 = vpack.c.bf16 %v299, %v298
  %v374 = vpack.c.bf16 %v301, %v300
  %v375 = vpack.c.bf16 %v303, %v302
  %v384 = vunpack.c.l.b16 %v365
  %v385 = vunpack.c.l.b16 %v366
  %v386 = vunpack.c.l.b16 %v367
  %v387 = vunpack.c.l.b16 %v368
  %v388 = vunpack.c.l.b16 %v369
  %v389 = vunpack.c.l.b16 %v370
  %v390 = vunpack.c.l.b16 %v371
  %v391 = vunpack.c.l.b16 %v372
  %v392 = vpack.c.b16 %v385, %v384
  %v393 = vpack.c.b16 %v387, %v386
  %v394 = vpack.c.b16 %v389, %v388
  %v395 = vpack.c.b16 %v391, %v390
  %v401 = vsel %vm337, %v373, 0
  %v404 = vsel %vm337, %v374, 0
  %v407 = vsel %vm337, %v375, 0
  %409 = vmatpush.bf16.msra.mxu0 0
  %410 = vmatpush.bf16.msra.mxu0 0
  %411 = vmatpush.bf16.msra.mxu0 0
  %412 = vmatpush.bf16.msra.mxu0 0
  %413 = vmatpush.bf16.msra.mxu0 %v395
  %414 = vmatpush.bf16.msra.mxu0 %v394
  %415 = vmatpush.bf16.msra.mxu0 %v393
  %416 = vmatpush.bf16.msra.mxu0 %v392
  %417 = vmatmul.bf16.gmra.mxu0 %v401
  %v418 = vpop.f32.mrf.mxu0
  %v419 = vadd.f32 0.0, %v418
  %v420 = vpop.f32.mrf.mxu0
  %v421 = vadd.f32 0.0, %v420
  %422 = vmatmul.bf16.gmra.mxu0 %v404
  %v423 = vpop.f32.mrf.mxu0
  %v424 = vadd.f32 0.0, %v423
  %v425 = vpop.f32.mrf.mxu0
  %v426 = vadd.f32 0.0, %v425
  %427 = vmatmul.bf16.gmra.mxu0 %v407
  %v428 = vpop.f32.mrf.mxu0
  %v429 = vadd.f32 0.0, %v428
  %v430 = vpop.f32.mrf.mxu0
  %v431 = vadd.f32 0.0, %v430
  %432 = vdwg.mxu0
  %vm433 = vcmask 261120
  %v435 = vsel %vm433, %v206, 0
  %v438 = vsel %vm433, %v207, 0
  %v441 = vsel %vm433, %v208, 0
  %443 = vmatpush.bf16.msra.mxu0 0
  %444 = vmatpush.bf16.msra.mxu0 0
  %445 = vmatpush.bf16.msra.mxu0 0
  %446 = vmatpush.bf16.msra.mxu0 0
  %447 = vmatpush.bf16.msra.mxu0 0
  %448 = vmatpush.bf16.msra.mxu0 0
  %449 = vmatpush.bf16.msra.mxu0 %v364
  %450 = vmatpush.bf16.msra.mxu0 %v363
  %451 = vmatmul.bf16.gmra.mxu0 %v435
  %v452 = vpop.f32.mrf.mxu0
  %v453 = vadd.f32 %v419, %v452
  %v454 = vpop.f32.mrf.mxu0
  %v455 = vadd.f32 %v421, %v454
  %456 = vmatmul.bf16.gmra.mxu0 %v438
  %v457 = vpop.f32.mrf.mxu0
  %v458 = vadd.f32 %v424, %v457
  %v459 = vpop.f32.mrf.mxu0
  %v460 = vadd.f32 %v426, %v459
  %461 = vmatmul.bf16.gmra.mxu0 %v441
  %v462 = vpop.f32.mrf.mxu0
  %v463 = vadd.f32 %v429, %v462
  %v464 = vpop.f32.mrf.mxu0
  %v465 = vadd.f32 %v431, %v464
  %466 = vdwg.mxu0
  %v467 = vld [vmem:[%s10] sm:$0x1]
  %v469 = vperm.slane %v467, 0
  %v471 = vadd.f32 %v453, %v469
  %v472 = vadd.f32 %v455, %v469
  %v473 = vadd.f32 %v458, %v469
  %v474 = vadd.f32 %v460, %v469
  %v475 = vadd.f32 %v463, %v469
  %v476 = vadd.f32 %v465, %v469
  %v477 = vmax.f32 %v471, 0.0
  %v478 = vmax.f32 %v472, 0.0
  %v479 = vmax.f32 %v473, 0.0
  %v480 = vmax.f32 %v474, 0.0
  %v481 = vmax.f32 %v475, 0.0
  %v482 = vmax.f32 %v476, 0.0
  %v483 = vpack.c.bf16 %v478, %v477
  %v484 = vpack.c.bf16 %v480, %v479
  %v485 = vpack.c.bf16 %v482, %v481
  %486 = vxpose.xlu0.c.b16.start [1/8] %v119, 128
  %487 = vxpose.xlu0.c.b16.cont [2/8] %v120, 128
  %488 = vxpose.xlu0.c.b16.cont [3/8] %v121, 128
  %489 = vxpose.xlu0.c.b16.cont [4/8] 0, 128
  %490 = vxpose.xlu0.c.b16.cont [5/8] 0, 128
  %491 = vxpose.xlu0.c.b16.cont [6/8] 0, 128
  %492 = vxpose.xlu0.c.b16.cont [7/8] 0, 128
  %493 = vxpose.xlu0.c.b16.end [8/8] 0, 128
  %v494 = vpop.trf.xlu0
  %v495 = vpop.trf.xlu0
  %v496 = vpop.trf.xlu0
  %v497 = vpop.trf.xlu0
  %v498 = vpop.trf.xlu0
  %v499 = vpop.trf.xlu0
  %v500 = vpop.trf.xlu0
  %v501 = vpop.trf.xlu0
  %vm502 = vcmask 392192
  %v504 = vsel %vm502, %v494, 0
  %506 = vmatpush.bf16.msra.mxu0 0
  %507 = vmatpush.bf16.msra.mxu0 0
  %508 = vmatpush.bf16.msra.mxu0 0
  %509 = vmatpush.bf16.msra.mxu0 0
  %510 = vmatpush.bf16.msra.mxu0 0
  %511 = vmatpush.bf16.msra.mxu0 %v485
  %512 = vmatpush.bf16.msra.mxu0 %v484
  %513 = vmatpush.bf16.msra.mxu0 %v483
  %514 = vmatmul.bf16.gmra.mxu0 %v504
  %v515 = vpop.f32.mrf.mxu0
  %v516 = vadd.f32 0.0, %v515
  %v517 = vpop.f32.mrf.mxu0
  %v518 = vadd.f32 0.0, %v517
  %519 = vdwg.mxu0
  %522 = vrot.lane.b32.xlu0 %v516, 64
  %v523 = vpop.permute.xlu0 %522
  %524 = vrot.lane.b32.xlu0 %v518, 64
  %v525 = vpop.permute.xlu0 %524
  %v528 = vsel %vm337, %v242, %v523
  %v529 = vsel %vm337, %v243, %v525
  %v530 = vld [vmem:[%s11] sm:$0xf]
  %v531 = vld [vmem:[%s11 + $0x4] sm:$0xf]
  %v532 = vld [vmem:[%s11 + $0x8] sm:$0xf]
  %v533 = vld [vmem:[%s11 + $0xc] sm:$0xf]
  %v534 = vld [vmem:[%s11 + $0x10] sm:$0xf]
  %v535 = vld [vmem:[%s11 + $0x14] sm:$0xf]
  %v536 = vld [vmem:[%s11 + $0x18] sm:$0xf]
  %v537 = vld [vmem:[%s11 + $0x1c] sm:$0xf]
  %v538 = vld [vmem:[%s11 + $0x20] sm:$0xf]
  %v539 = vld [vmem:[%s11 + $0x24] sm:$0xf]
  %v540 = vld [vmem:[%s11 + $0x28] sm:$0xf]
  %v541 = vld [vmem:[%s11 + $0x2c] sm:$0xf]
  %v542 = vld [vmem:[%s11 + $0x30] sm:$0xf]
  %v543 = vld [vmem:[%s11 + $0x34] sm:$0xf]
  %v544 = vld [vmem:[%s11 + $0x38] sm:$0xf]
  %v545 = vld [vmem:[%s11 + $0x3c] sm:$0xf]
  %v546 = vpack.c.bf16 %v529, %v528
  %v547 = vld [vmem:[%s12] sm:$0x1]
  %v549 = vperm.slane %v547, 0
  %v567 = vunpack.c.l.b16 %v530
  %v568 = vunpack.c.l.b16 %v531
  %v569 = vunpack.c.l.b16 %v532
  %v570 = vunpack.c.l.b16 %v533
  %v571 = vunpack.c.l.b16 %v534
  %v572 = vunpack.c.l.b16 %v535
  %v573 = vunpack.c.l.b16 %v536
  %v574 = vunpack.c.l.b16 %v537
  %v575 = vunpack.c.l.b16 %v538
  %v576 = vunpack.c.l.b16 %v539
  %v577 = vunpack.c.l.b16 %v540
  %v578 = vunpack.c.l.b16 %v541
  %v579 = vunpack.c.l.b16 %v542
  %v580 = vunpack.c.l.b16 %v543
  %v581 = vunpack.c.l.b16 %v544
  %v582 = vunpack.c.l.b16 %v545
  %v583 = vpack.c.b16 %v568, %v567
  %v584 = vpack.c.b16 %v570, %v569
  %v585 = vpack.c.b16 %v572, %v571
  %v586 = vpack.c.b16 %v574, %v573
  %v587 = vpack.c.b16 %v576, %v575
  %v588 = vpack.c.b16 %v578, %v577
  %v589 = vpack.c.b16 %v580, %v579
  %v590 = vpack.c.b16 %v582, %v581
  %599 = vmatpush.bf16.msra.mxu0 %v590
  %600 = vmatpush.bf16.msra.mxu0 %v589
  %601 = vmatpush.bf16.msra.mxu0 %v588
  %602 = vmatpush.bf16.msra.mxu0 %v587
  %603 = vmatpush.bf16.msra.mxu0 %v586
  %604 = vmatpush.bf16.msra.mxu0 %v585
  %605 = vmatpush.bf16.msra.mxu0 %v584
  %606 = vmatpush.bf16.msra.mxu0 %v583
  %607 = vmatmul.bf16.gmra.mxu0 %v546
  %v608 = vpop.f32.mrf.mxu0
  %v609 = vadd.f32 %v549, %v608
  %v610 = vpop.f32.mrf.mxu0
  %v611 = vadd.f32 %v549, %v610
  %612 = vdwg.mxu0
  %v613 = vmax.f32 %v609, 0.0
  %v614 = vmax.f32 %v611, 0.0
  %621 = vrot.lane.b32.xlu0 %v477, 64
  %v622 = vpop.permute.xlu0 %621
  %623 = vrot.lane.b32.xlu0 %v478, 64
  %v624 = vpop.permute.xlu0 %623
  %625 = vrot.lane.b32.xlu0 %v479, 64
  %v626 = vpop.permute.xlu0 %625
  %627 = vrot.lane.b32.xlu0 %v480, 64
  %v628 = vpop.permute.xlu0 %627
  %629 = vrot.lane.b32.xlu0 %v481, 64
  %v630 = vpop.permute.xlu0 %629
  %631 = vrot.lane.b32.xlu0 %v482, 64
  %v632 = vpop.permute.xlu0 %631
  %v639 = vsel %vm337, %v298, %v622
  %v640 = vsel %vm337, %v299, %v624
  %v641 = vsel %vm337, %v300, %v626
  %v642 = vsel %vm337, %v301, %v628
  %v643 = vsel %vm337, %v302, %v630
  %v644 = vsel %vm337, %v303, %v632
  %v645 = vld [vmem:[%s13] sm:$0xf]
  %v646 = vld [vmem:[%s13 + $0x4] sm:$0xf]
  %v647 = vld [vmem:[%s13 + $0x8] sm:$0xf]
  %v648 = vld [vmem:[%s13 + $0xc] sm:$0xf]
  %v649 = vld [vmem:[%s13 + $0x10] sm:$0xf]
  %v650 = vld [vmem:[%s13 + $0x14] sm:$0xf]
  %v651 = vld [vmem:[%s13 + $0x18] sm:$0xf]
  %v652 = vld [vmem:[%s13 + $0x1c] sm:$0xf]
  %v653 = vld [vmem:[%s13 + $0x20] sm:$0xf]
  %v654 = vld [vmem:[%s13 + $0x24] sm:$0xf]
  %v655 = vld [vmem:[%s13 + $0x28] sm:$0xf]
  %v656 = vld [vmem:[%s13 + $0x2c] sm:$0xf]
  %v657 = vld [vmem:[%s13 + $0x30] sm:$0xf]
  %v658 = vld [vmem:[%s13 + $0x34] sm:$0xf]
  %v659 = vld [vmem:[%s13 + $0x38] sm:$0xf]
  %v660 = vld [vmem:[%s13 + $0x3c] sm:$0xf]
  %v661 = vpack.c.bf16 %v640, %v639
  %v662 = vpack.c.bf16 %v642, %v641
  %v663 = vpack.c.bf16 %v644, %v643
  %v664 = vld [vmem:[%s14] sm:$0x1]
  %v666 = vperm.slane %v664, 0
  %v684 = vunpack.c.l.b16 %v645
  %v685 = vunpack.c.l.b16 %v646
  %v686 = vunpack.c.l.b16 %v647
  %v687 = vunpack.c.l.b16 %v648
  %v688 = vunpack.c.l.b16 %v649
  %v689 = vunpack.c.l.b16 %v650
  %v690 = vunpack.c.l.b16 %v651
  %v691 = vunpack.c.l.b16 %v652
  %v692 = vunpack.c.l.b16 %v653
  %v693 = vunpack.c.l.b16 %v654
  %v694 = vunpack.c.l.b16 %v655
  %v695 = vunpack.c.l.b16 %v656
  %v696 = vunpack.c.l.b16 %v657
  %v697 = vunpack.c.l.b16 %v658
  %v698 = vunpack.c.l.b16 %v659
  %v699 = vunpack.c.l.b16 %v660
  %v700 = vpack.c.b16 %v685, %v684
  %v701 = vpack.c.b16 %v687, %v686
  %v702 = vpack.c.b16 %v689, %v688
  %v703 = vpack.c.b16 %v691, %v690
  %v704 = vpack.c.b16 %v693, %v692
  %v705 = vpack.c.b16 %v695, %v694
  %v706 = vpack.c.b16 %v697, %v696
  %v707 = vpack.c.b16 %v699, %v698
  %716 = vmatpush.bf16.msra.mxu0 %v707
  %717 = vmatpush.bf16.msra.mxu0 %v706
  %718 = vmatpush.bf16.msra.mxu0 %v705
  %719 = vmatpush.bf16.msra.mxu0 %v704
  %720 = vmatpush.bf16.msra.mxu0 %v703
  %721 = vmatpush.bf16.msra.mxu0 %v702
  %722 = vmatpush.bf16.msra.mxu0 %v701
  %723 = vmatpush.bf16.msra.mxu0 %v700
  %724 = vmatmul.bf16.gmra.mxu0 %v661
  %v725 = vpop.f32.mrf.mxu0
  %v726 = vadd.f32 %v666, %v725
  %v727 = vpop.f32.mrf.mxu0
  %v728 = vadd.f32 %v666, %v727
  %729 = vmatmul.bf16.gmra.mxu0 %v662
  %v730 = vpop.f32.mrf.mxu0
  %v731 = vadd.f32 %v666, %v730
  %v732 = vpop.f32.mrf.mxu0
  %v733 = vadd.f32 %v666, %v732
  %734 = vmatmul.bf16.gmra.mxu0 %v663
  %v735 = vpop.f32.mrf.mxu0
  %v736 = vadd.f32 %v666, %v735
  %v737 = vpop.f32.mrf.mxu0
  %v738 = vadd.f32 %v666, %v737
  %739 = vdwg.mxu0
  %v740 = vmax.f32 %v726, 0.0
  %v741 = vmax.f32 %v728, 0.0
  %v742 = vmax.f32 %v731, 0.0
  %v743 = vmax.f32 %v733, 0.0
  %v744 = vmax.f32 %v736, 0.0
  %v745 = vmax.f32 %v738, 0.0
  %s746 = scalar_lea.vmem %s8, 32
  %v747 = vld [vmem:[%s746] sm:$0xf]
  %v748 = vld [vmem:[%s746 + $0x4] sm:$0xf]
  %v749 = vld [vmem:[%s746 + $0x8] sm:$0xf]
  %v750 = vld [vmem:[%s746 + $0xc] sm:$0xf]
  %v751 = vld [vmem:[%s746 + $0x10] sm:$0xf]
  %v752 = vld [vmem:[%s746 + $0x14] sm:$0xf]
  %v753 = vld [vmem:[%s746 + $0x18] sm:$0xf]
  %v754 = vld [vmem:[%s746 + $0x1c] sm:$0xf]
  %v755 = vpack.c.bf16 %v614, %v613
  %v764 = vunpack.c.l.b16 %v747
  %v765 = vunpack.c.l.b16 %v748
  %v766 = vunpack.c.l.b16 %v749
  %v767 = vunpack.c.l.b16 %v750
  %v768 = vunpack.c.l.b16 %v751
  %v769 = vunpack.c.l.b16 %v752
  %v770 = vunpack.c.l.b16 %v753
  %v771 = vunpack.c.l.b16 %v754
  %v772 = vpack.c.b16 %v765, %v764
  %v773 = vpack.c.b16 %v767, %v766
  %v774 = vpack.c.b16 %v769, %v768
  %v775 = vpack.c.b16 %v771, %v770
  %v781 = vsel %vm337, %v755, 0
  %783 = vmatpush.bf16.msra.mxu0 0
  %784 = vmatpush.bf16.msra.mxu0 0
  %785 = vmatpush.bf16.msra.mxu0 0
  %786 = vmatpush.bf16.msra.mxu0 0
  %787 = vmatpush.bf16.msra.mxu0 %v775
  %788 = vmatpush.bf16.msra.mxu0 %v774
  %789 = vmatpush.bf16.msra.mxu0 %v773
  %790 = vmatpush.bf16.msra.mxu0 %v772
  %791 = vmatmul.bf16.gmra.mxu0 %v781
  %v792 = vpop.f32.mrf.mxu0
  %v793 = vadd.f32 0.0, %v792
  %v794 = vpop.f32.mrf.mxu0
  %v795 = vadd.f32 0.0, %v794
  %796 = vdwg.mxu0
  %799 = vrot.lane.b32.xlu0 %v793, 64
  %v800 = vpop.permute.xlu0 %799
  %801 = vrot.lane.b32.xlu0 %v795, 64
  %v802 = vpop.permute.xlu0 %801
  %v805 = vpack.c.bf16 %v795, %v793
  %v806 = vpack.c.bf16 %v802, %v800
  %s807 = scalar_lea.vmem %s9, 32
  %v808 = vld [vmem:[%s807] sm:$0xf]
  %v809 = vld [vmem:[%s807 + $0x4] sm:$0xf]
  %v810 = vld [vmem:[%s807 + $0x8] sm:$0xf]
  %v811 = vld [vmem:[%s807 + $0xc] sm:$0xf]
  %v812 = vld [vmem:[%s807 + $0x10] sm:$0xf]
  %v813 = vld [vmem:[%s807 + $0x14] sm:$0xf]
  %v814 = vld [vmem:[%s807 + $0x18] sm:$0xf]
  %v815 = vld [vmem:[%s807 + $0x1c] sm:$0xf]
  %v816 = vpack.c.bf16 %v741, %v740
  %v817 = vpack.c.bf16 %v743, %v742
  %v818 = vpack.c.bf16 %v745, %v744
  %v827 = vunpack.c.l.b16 %v808
  %v828 = vunpack.c.l.b16 %v809
  %v829 = vunpack.c.l.b16 %v810
  %v830 = vunpack.c.l.b16 %v811
  %v831 = vunpack.c.l.b16 %v812
  %v832 = vunpack.c.l.b16 %v813
  %v833 = vunpack.c.l.b16 %v814
  %v834 = vunpack.c.l.b16 %v815
  %v835 = vpack.c.b16 %v828, %v827
  %v836 = vpack.c.b16 %v830, %v829
  %v837 = vpack.c.b16 %v832, %v831
  %v838 = vpack.c.b16 %v834, %v833
  %v844 = vsel %vm337, %v816, 0
  %v847 = vsel %vm337, %v817, 0
  %v850 = vsel %vm337, %v818, 0
  %852 = vmatpush.bf16.msra.mxu0 0
  %853 = vmatpush.bf16.msra.mxu0 0
  %854 = vmatpush.bf16.msra.mxu0 0
  %855 = vmatpush.bf16.msra.mxu0 0
  %856 = vmatpush.bf16.msra.mxu0 %v838
  %857 = vmatpush.bf16.msra.mxu0 %v837
  %858 = vmatpush.bf16.msra.mxu0 %v836
  %859 = vmatpush.bf16.msra.mxu0 %v835
  %860 = vmatmul.bf16.gmra.mxu0 %v844
  %v861 = vpop.f32.mrf.mxu0
  %v862 = vadd.f32 0.0, %v861
  %v863 = vpop.f32.mrf.mxu0
  %v864 = vadd.f32 0.0, %v863
  %865 = vmatmul.bf16.gmra.mxu0 %v847
  %v866 = vpop.f32.mrf.mxu0
  %v867 = vadd.f32 0.0, %v866
  %v868 = vpop.f32.mrf.mxu0
  %v869 = vadd.f32 0.0, %v868
  %870 = vmatmul.bf16.gmra.mxu0 %v850
  %v871 = vpop.f32.mrf.mxu0
  %v872 = vadd.f32 0.0, %v871
  %v873 = vpop.f32.mrf.mxu0
  %v874 = vadd.f32 0.0, %v873
  %875 = vdwg.mxu0
  %876 = vmatpush.bf16.msra.mxu0 0
  %877 = vmatpush.bf16.msra.mxu0 0
  %878 = vmatpush.bf16.msra.mxu0 0
  %879 = vmatpush.bf16.msra.mxu0 0
  %880 = vmatpush.bf16.msra.mxu0 0
  %881 = vmatpush.bf16.msra.mxu0 0
  %882 = vmatpush.bf16.msra.mxu0 %v806
  %883 = vmatpush.bf16.msra.mxu0 %v805
  %884 = vmatmul.bf16.gmra.mxu0 %v435
  %v885 = vpop.f32.mrf.mxu0
  %v886 = vadd.f32 %v862, %v885
  %v887 = vpop.f32.mrf.mxu0
  %v888 = vadd.f32 %v864, %v887
  %889 = vmatmul.bf16.gmra.mxu0 %v438
  %v890 = vpop.f32.mrf.mxu0
  %v891 = vadd.f32 %v867, %v890
  %v892 = vpop.f32.mrf.mxu0
  %v893 = vadd.f32 %v869, %v892
  %894 = vmatmul.bf16.gmra.mxu0 %v441
  %v895 = vpop.f32.mrf.mxu0
  %v896 = vadd.f32 %v872, %v895
  %v897 = vpop.f32.mrf.mxu0
  %v898 = vadd.f32 %v874, %v897
  %899 = vdwg.mxu0
  %s900 = scalar_lea.vmem %s10, 1
  %v901 = vld [vmem:[%s900] sm:$0x1]
  %v903 = vperm.slane %v901, 0
  %v905 = vadd.f32 %v886, %v903
  %v906 = vadd.f32 %v888, %v903
  %v907 = vadd.f32 %v891, %v903
  %v908 = vadd.f32 %v893, %v903
  %v909 = vadd.f32 %v896, %v903
  %v910 = vadd.f32 %v898, %v903
  %v911 = vmax.f32 %v905, 0.0
  %v912 = vmax.f32 %v906, 0.0
  %v913 = vmax.f32 %v907, 0.0
  %v914 = vmax.f32 %v908, 0.0
  %v915 = vmax.f32 %v909, 0.0
  %v916 = vmax.f32 %v910, 0.0
  %v917 = vpack.c.bf16 %v912, %v911
  %v918 = vpack.c.bf16 %v914, %v913
  %v919 = vpack.c.bf16 %v916, %v915
  %920 = vmatpush.bf16.msra.mxu0 0
  %921 = vmatpush.bf16.msra.mxu0 0
  %922 = vmatpush.bf16.msra.mxu0 0
  %923 = vmatpush.bf16.msra.mxu0 0
  %924 = vmatpush.bf16.msra.mxu0 0
  %925 = vmatpush.bf16.msra.mxu0 %v919
  %926 = vmatpush.bf16.msra.mxu0 %v918
  %927 = vmatpush.bf16.msra.mxu0 %v917
  %928 = vmatmul.bf16.gmra.mxu0 %v504
  %v929 = vpop.f32.mrf.mxu0
  %v930 = vadd.f32 0.0, %v929
  %v931 = vpop.f32.mrf.mxu0
  %v932 = vadd.f32 0.0, %v931
  %933 = vdwg.mxu0
  %936 = vrot.lane.b32.xlu0 %v930, 64
  %v937 = vpop.permute.xlu0 %936
  %938 = vrot.lane.b32.xlu0 %v932, 64
  %v939 = vpop.permute.xlu0 %938
  %v942 = vsel %vm337, %v613, %v937
  %v943 = vsel %vm337, %v614, %v939
  %s944 = scalar_lea.vmem %s11, 64
  %v945 = vld [vmem:[%s944] sm:$0xf]
  %v946 = vld [vmem:[%s944 + $0x4] sm:$0xf]
  %v947 = vld [vmem:[%s944 + $0x8] sm:$0xf]
  %v948 = vld [vmem:[%s944 + $0xc] sm:$0xf]
  %v949 = vld [vmem:[%s944 + $0x10] sm:$0xf]
  %v950 = vld [vmem:[%s944 + $0x14] sm:$0xf]
  %v951 = vld [vmem:[%s944 + $0x18] sm:$0xf]
  %v952 = vld [vmem:[%s944 + $0x1c] sm:$0xf]
  %v953 = vld [vmem:[%s944 + $0x20] sm:$0xf]
  %v954 = vld [vmem:[%s944 + $0x24] sm:$0xf]
  %v955 = vld [vmem:[%s944 + $0x28] sm:$0xf]
  %v956 = vld [vmem:[%s944 + $0x2c] sm:$0xf]
  %v957 = vld [vmem:[%s944 + $0x30] sm:$0xf]
  %v958 = vld [vmem:[%s944 + $0x34] sm:$0xf]
  %v959 = vld [vmem:[%s944 + $0x38] sm:$0xf]
  %v960 = vld [vmem:[%s944 + $0x3c] sm:$0xf]
  %v961 = vpack.c.bf16 %v943, %v942
  %s962 = scalar_lea.vmem %s12, 1
  %v963 = vld [vmem:[%s962] sm:$0x1]
  %v965 = vperm.slane %v963, 0
  %v983 = vunpack.c.l.b16 %v945
  %v984 = vunpack.c.l.b16 %v946
  %v985 = vunpack.c.l.b16 %v947
  %v986 = vunpack.c.l.b16 %v948
  %v987 = vunpack.c.l.b16 %v949
  %v988 = vunpack.c.l.b16 %v950
  %v989 = vunpack.c.l.b16 %v951
  %v990 = vunpack.c.l.b16 %v952
  %v991 = vunpack.c.l.b16 %v953
  %v992 = vunpack.c.l.b16 %v954
  %v993 = vunpack.c.l.b16 %v955
  %v994 = vunpack.c.l.b16 %v956
  %v995 = vunpack.c.l.b16 %v957
  %v996 = vunpack.c.l.b16 %v958
  %v997 = vunpack.c.l.b16 %v959
  %v998 = vunpack.c.l.b16 %v960
  %v999 = vpack.c.b16 %v984, %v983
  %v1000 = vpack.c.b16 %v986, %v985
  %v1001 = vpack.c.b16 %v988, %v987
  %v1002 = vpack.c.b16 %v990, %v989
  %v1003 = vpack.c.b16 %v992, %v991
  %v1004 = vpack.c.b16 %v994, %v993
  %v1005 = vpack.c.b16 %v996, %v995
  %v1006 = vpack.c.b16 %v998, %v997
  %1015 = vmatpush.bf16.msra.mxu0 %v1006
  %1016 = vmatpush.bf16.msra.mxu0 %v1005
  %1017 = vmatpush.bf16.msra.mxu0 %v1004
  %1018 = vmatpush.bf16.msra.mxu0 %v1003
  %1019 = vmatpush.bf16.msra.mxu0 %v1002
  %1020 = vmatpush.bf16.msra.mxu0 %v1001
  %1021 = vmatpush.bf16.msra.mxu0 %v1000
  %1022 = vmatpush.bf16.msra.mxu0 %v999
  %1023 = vmatmul.bf16.gmra.mxu0 %v961
  %v1024 = vpop.f32.mrf.mxu0
  %v1025 = vadd.f32 %v965, %v1024
  %v1026 = vpop.f32.mrf.mxu0
  %v1027 = vadd.f32 %v965, %v1026
  %1028 = vdwg.mxu0
  %v1029 = vmax.f32 %v1025, 0.0
  %v1030 = vmax.f32 %v1027, 0.0
  %1037 = vrot.lane.b32.xlu0 %v911, 64
  %v1038 = vpop.permute.xlu0 %1037
  %1039 = vrot.lane.b32.xlu0 %v912, 64
  %v1040 = vpop.permute.xlu0 %1039
  %1041 = vrot.lane.b32.xlu0 %v913, 64
  %v1042 = vpop.permute.xlu0 %1041
  %1043 = vrot.lane.b32.xlu0 %v914, 64
  %v1044 = vpop.permute.xlu0 %1043
  %1045 = vrot.lane.b32.xlu0 %v915, 64
  %v1046 = vpop.permute.xlu0 %1045
  %1047 = vrot.lane.b32.xlu0 %v916, 64
  %v1048 = vpop.permute.xlu0 %1047
  %v1055 = vsel %vm337, %v740, %v1038
  %v1056 = vsel %vm337, %v741, %v1040
  %v1057 = vsel %vm337, %v742, %v1042
  %v1058 = vsel %vm337, %v743, %v1044
  %v1059 = vsel %vm337, %v744, %v1046
  %v1060 = vsel %vm337, %v745, %v1048
  %s1061 = scalar_lea.vmem %s13, 64
  %v1062 = vld [vmem:[%s1061] sm:$0xf]
  %v1063 = vld [vmem:[%s1061 + $0x4] sm:$0xf]
  %v1064 = vld [vmem:[%s1061 + $0x8] sm:$0xf]
  %v1065 = vld [vmem:[%s1061 + $0xc] sm:$0xf]
  %v1066 = vld [vmem:[%s1061 + $0x10] sm:$0xf]
  %v1067 = vld [vmem:[%s1061 + $0x14] sm:$0xf]
  %v1068 = vld [vmem:[%s1061 + $0x18] sm:$0xf]
  %v1069 = vld [vmem:[%s1061 + $0x1c] sm:$0xf]
  %v1070 = vld [vmem:[%s1061 + $0x20] sm:$0xf]
  %v1071 = vld [vmem:[%s1061 + $0x24] sm:$0xf]
  %v1072 = vld [vmem:[%s1061 + $0x28] sm:$0xf]
  %v1073 = vld [vmem:[%s1061 + $0x2c] sm:$0xf]
  %v1074 = vld [vmem:[%s1061 + $0x30] sm:$0xf]
  %v1075 = vld [vmem:[%s1061 + $0x34] sm:$0xf]
  %v1076 = vld [vmem:[%s1061 + $0x38] sm:$0xf]
  %v1077 = vld [vmem:[%s1061 + $0x3c] sm:$0xf]
  %v1078 = vpack.c.bf16 %v1056, %v1055
  %v1079 = vpack.c.bf16 %v1058, %v1057
  %v1080 = vpack.c.bf16 %v1060, %v1059
  %s1081 = scalar_lea.vmem %s14, 1
  %v1082 = vld [vmem:[%s1081] sm:$0x1]
  %v1084 = vperm.slane %v1082, 0
  %v1102 = vunpack.c.l.b16 %v1062
  %v1103 = vunpack.c.l.b16 %v1063
  %v1104 = vunpack.c.l.b16 %v1064
  %v1105 = vunpack.c.l.b16 %v1065
  %v1106 = vunpack.c.l.b16 %v1066
  %v1107 = vunpack.c.l.b16 %v1067
  %v1108 = vunpack.c.l.b16 %v1068
  %v1109 = vunpack.c.l.b16 %v1069
  %v1110 = vunpack.c.l.b16 %v1070
  %v1111 = vunpack.c.l.b16 %v1071
  %v1112 = vunpack.c.l.b16 %v1072
  %v1113 = vunpack.c.l.b16 %v1073
  %v1114 = vunpack.c.l.b16 %v1074
  %v1115 = vunpack.c.l.b16 %v1075
  %v1116 = vunpack.c.l.b16 %v1076
  %v1117 = vunpack.c.l.b16 %v1077
  %v1118 = vpack.c.b16 %v1103, %v1102
  %v1119 = vpack.c.b16 %v1105, %v1104
  %v1120 = vpack.c.b16 %v1107, %v1106
  %v1121 = vpack.c.b16 %v1109, %v1108
  %v1122 = vpack.c.b16 %v1111, %v1110
  %v1123 = vpack.c.b16 %v1113, %v1112
  %v1124 = vpack.c.b16 %v1115, %v1114
  %v1125 = vpack.c.b16 %v1117, %v1116
  %1134 = vmatpush.bf16.msra.mxu0 %v1125
  %1135 = vmatpush.bf16.msra.mxu0 %v1124
  %1136 = vmatpush.bf16.msra.mxu0 %v1123
  %1137 = vmatpush.bf16.msra.mxu0 %v1122
  %1138 = vmatpush.bf16.msra.mxu0 %v1121
  %1139 = vmatpush.bf16.msra.mxu0 %v1120
  %1140 = vmatpush.bf16.msra.mxu0 %v1119
  %1141 = vmatpush.bf16.msra.mxu0 %v1118
  %1142 = vmatmul.bf16.gmra.mxu0 %v1078
  %v1143 = vpop.f32.mrf.mxu0
  %v1144 = vadd.f32 %v1084, %v1143
  %v1145 = vpop.f32.mrf.mxu0
  %v1146 = vadd.f32 %v1084, %v1145
  %1147 = vmatmul.bf16.gmra.mxu0 %v1079
  %v1148 = vpop.f32.mrf.mxu0
  %v1149 = vadd.f32 %v1084, %v1148
  %v1150 = vpop.f32.mrf.mxu0
  %v1151 = vadd.f32 %v1084, %v1150
  %1152 = vmatmul.bf16.gmra.mxu0 %v1080
  %v1153 = vpop.f32.mrf.mxu0
  %v1154 = vadd.f32 %v1084, %v1153
  %v1155 = vpop.f32.mrf.mxu0
  %v1156 = vadd.f32 %v1084, %v1155
  %1157 = vdwg.mxu0
  %v1158 = vmax.f32 %v1144, 0.0
  %v1159 = vmax.f32 %v1146, 0.0
  %v1160 = vmax.f32 %v1149, 0.0
  %v1161 = vmax.f32 %v1151, 0.0
  %v1162 = vmax.f32 %v1154, 0.0
  %v1163 = vmax.f32 %v1156, 0.0
  %s1164 = scalar_lea.vmem %s8, 64
  %v1165 = vld [vmem:[%s1164] sm:$0xf]
  %v1166 = vld [vmem:[%s1164 + $0x4] sm:$0xf]
  %v1167 = vld [vmem:[%s1164 + $0x8] sm:$0xf]
  %v1168 = vld [vmem:[%s1164 + $0xc] sm:$0xf]
  %v1169 = vld [vmem:[%s1164 + $0x10] sm:$0xf]
  %v1170 = vld [vmem:[%s1164 + $0x14] sm:$0xf]
  %v1171 = vld [vmem:[%s1164 + $0x18] sm:$0xf]
  %v1172 = vld [vmem:[%s1164 + $0x1c] sm:$0xf]
  %v1173 = vpack.c.bf16 %v1030, %v1029
  %v1182 = vunpack.c.l.b16 %v1165
  %v1183 = vunpack.c.l.b16 %v1166
  %v1184 = vunpack.c.l.b16 %v1167
  %v1185 = vunpack.c.l.b16 %v1168
  %v1186 = vunpack.c.l.b16 %v1169
  %v1187 = vunpack.c.l.b16 %v1170
  %v1188 = vunpack.c.l.b16 %v1171
  %v1189 = vunpack.c.l.b16 %v1172
  %v1190 = vpack.c.b16 %v1183, %v1182
  %v1191 = vpack.c.b16 %v1185, %v1184
  %v1192 = vpack.c.b16 %v1187, %v1186
  %v1193 = vpack.c.b16 %v1189, %v1188
  %v1199 = vsel %vm337, %v1173, 0
  %1201 = vmatpush.bf16.msra.mxu0 0
  %1202 = vmatpush.bf16.msra.mxu0 0
  %1203 = vmatpush.bf16.msra.mxu0 0
  %1204 = vmatpush.bf16.msra.mxu0 0
  %1205 = vmatpush.bf16.msra.mxu0 %v1193
  %1206 = vmatpush.bf16.msra.mxu0 %v1192
  %1207 = vmatpush.bf16.msra.mxu0 %v1191
  %1208 = vmatpush.bf16.msra.mxu0 %v1190
  %1209 = vmatmul.bf16.gmra.mxu0 %v1199
  %v1210 = vpop.f32.mrf.mxu0
  %v1211 = vadd.f32 0.0, %v1210
  %v1212 = vpop.f32.mrf.mxu0
  %v1213 = vadd.f32 0.0, %v1212
  %1214 = vdwg.mxu0
  %1217 = vrot.lane.b32.xlu0 %v1211, 64
  %v1218 = vpop.permute.xlu0 %1217
  %1219 = vrot.lane.b32.xlu0 %v1213, 64
  %v1220 = vpop.permute.xlu0 %1219
  %v1223 = vpack.c.bf16 %v1213, %v1211
  %v1224 = vpack.c.bf16 %v1220, %v1218
  %s1225 = scalar_lea.vmem %s9, 64
  %v1226 = vld [vmem:[%s1225] sm:$0xf]
  %v1227 = vld [vmem:[%s1225 + $0x4] sm:$0xf]
  %v1228 = vld [vmem:[%s1225 + $0x8] sm:$0xf]
  %v1229 = vld [vmem:[%s1225 + $0xc] sm:$0xf]
  %v1230 = vld [vmem:[%s1225 + $0x10] sm:$0xf]
  %v1231 = vld [vmem:[%s1225 + $0x14] sm:$0xf]
  %v1232 = vld [vmem:[%s1225 + $0x18] sm:$0xf]
  %v1233 = vld [vmem:[%s1225 + $0x1c] sm:$0xf]
  %v1234 = vpack.c.bf16 %v1159, %v1158
  %v1235 = vpack.c.bf16 %v1161, %v1160
  %v1236 = vpack.c.bf16 %v1163, %v1162
  %v1245 = vunpack.c.l.b16 %v1226
  %v1246 = vunpack.c.l.b16 %v1227
  %v1247 = vunpack.c.l.b16 %v1228
  %v1248 = vunpack.c.l.b16 %v1229
  %v1249 = vunpack.c.l.b16 %v1230
  %v1250 = vunpack.c.l.b16 %v1231
  %v1251 = vunpack.c.l.b16 %v1232
  %v1252 = vunpack.c.l.b16 %v1233
  %v1253 = vpack.c.b16 %v1246, %v1245
  %v1254 = vpack.c.b16 %v1248, %v1247
  %v1255 = vpack.c.b16 %v1250, %v1249
  %v1256 = vpack.c.b16 %v1252, %v1251
  %v1262 = vsel %vm337, %v1234, 0
  %v1265 = vsel %vm337, %v1235, 0
  %v1268 = vsel %vm337, %v1236, 0
  %1270 = vmatpush.bf16.msra.mxu0 0
  %1271 = vmatpush.bf16.msra.mxu0 0
  %1272 = vmatpush.bf16.msra.mxu0 0
  %1273 = vmatpush.bf16.msra.mxu0 0
  %1274 = vmatpush.bf16.msra.mxu0 %v1256
  %1275 = vmatpush.bf16.msra.mxu0 %v1255
  %1276 = vmatpush.bf16.msra.mxu0 %v1254
  %1277 = vmatpush.bf16.msra.mxu0 %v1253
  %1278 = vmatmul.bf16.gmra.mxu0 %v1262
  %v1279 = vpop.f32.mrf.mxu0
  %v1280 = vadd.f32 0.0, %v1279
  %v1281 = vpop.f32.mrf.mxu0
  %v1282 = vadd.f32 0.0, %v1281
  %1283 = vmatmul.bf16.gmra.mxu0 %v1265
  %v1284 = vpop.f32.mrf.mxu0
  %v1285 = vadd.f32 0.0, %v1284
  %v1286 = vpop.f32.mrf.mxu0
  %v1287 = vadd.f32 0.0, %v1286
  %1288 = vmatmul.bf16.gmra.mxu0 %v1268
  %v1289 = vpop.f32.mrf.mxu0
  %v1290 = vadd.f32 0.0, %v1289
  %v1291 = vpop.f32.mrf.mxu0
  %v1292 = vadd.f32 0.0, %v1291
  %1293 = vdwg.mxu0
  %1294 = vmatpush.bf16.msra.mxu0 0
  %1295 = vmatpush.bf16.msra.mxu0 0
  %1296 = vmatpush.bf16.msra.mxu0 0
  %1297 = vmatpush.bf16.msra.mxu0 0
  %1298 = vmatpush.bf16.msra.mxu0 0
  %1299 = vmatpush.bf16.msra.mxu0 0
  %1300 = vmatpush.bf16.msra.mxu0 %v1224
  %1301 = vmatpush.bf16.msra.mxu0 %v1223
  %1302 = vmatmul.bf16.gmra.mxu0 %v435
  %v1303 = vpop.f32.mrf.mxu0
  %v1304 = vadd.f32 %v1280, %v1303
  %v1305 = vpop.f32.mrf.mxu0
  %v1306 = vadd.f32 %v1282, %v1305
  %1307 = vmatmul.bf16.gmra.mxu0 %v438
  %v1308 = vpop.f32.mrf.mxu0
  %v1309 = vadd.f32 %v1285, %v1308
  %v1310 = vpop.f32.mrf.mxu0
  %v1311 = vadd.f32 %v1287, %v1310
  %1312 = vmatmul.bf16.gmra.mxu0 %v441
  %v1313 = vpop.f32.mrf.mxu0
  %v1314 = vadd.f32 %v1290, %v1313
  %v1315 = vpop.f32.mrf.mxu0
  %v1316 = vadd.f32 %v1292, %v1315
  %1317 = vdwg.mxu0
  %s1318 = scalar_lea.vmem %s10, 2
  %v1319 = vld [vmem:[%s1318] sm:$0x1]
  %v1321 = vperm.slane %v1319, 0
  %v1323 = vadd.f32 %v1304, %v1321
  %v1324 = vadd.f32 %v1306, %v1321
  %v1325 = vadd.f32 %v1309, %v1321
  %v1326 = vadd.f32 %v1311, %v1321
  %v1327 = vadd.f32 %v1314, %v1321
  %v1328 = vadd.f32 %v1316, %v1321
  %v1329 = vmax.f32 %v1323, 0.0
  %v1330 = vmax.f32 %v1324, 0.0
  %v1331 = vmax.f32 %v1325, 0.0
  %v1332 = vmax.f32 %v1326, 0.0
  %v1333 = vmax.f32 %v1327, 0.0
  %v1334 = vmax.f32 %v1328, 0.0
  %v1335 = vpack.c.bf16 %v1330, %v1329
  %v1336 = vpack.c.bf16 %v1332, %v1331
  %v1337 = vpack.c.bf16 %v1334, %v1333
  %1338 = vmatpush.bf16.msra.mxu0 0
  %1339 = vmatpush.bf16.msra.mxu0 0
  %1340 = vmatpush.bf16.msra.mxu0 0
  %1341 = vmatpush.bf16.msra.mxu0 0
  %1342 = vmatpush.bf16.msra.mxu0 0
  %1343 = vmatpush.bf16.msra.mxu0 %v1337
  %1344 = vmatpush.bf16.msra.mxu0 %v1336
  %1345 = vmatpush.bf16.msra.mxu0 %v1335
  %1346 = vmatmul.bf16.gmra.mxu0 %v504
  %v1347 = vpop.f32.mrf.mxu0
  %v1348 = vadd.f32 0.0, %v1347
  %v1349 = vpop.f32.mrf.mxu0
  %v1350 = vadd.f32 0.0, %v1349
  %1351 = vdwg.mxu0
  %1354 = vrot.lane.b32.xlu0 %v1348, 64
  %v1355 = vpop.permute.xlu0 %1354
  %1356 = vrot.lane.b32.xlu0 %v1350, 64
  %v1357 = vpop.permute.xlu0 %1356
  %v1360 = vsel %vm337, %v1029, %v1355
  %v1361 = vsel %vm337, %v1030, %v1357
  %s1362 = scalar_lea.vmem %s11, 128
  %v1363 = vld [vmem:[%s1362] sm:$0xf]
  %v1364 = vld [vmem:[%s1362 + $0x4] sm:$0xf]
  %v1365 = vld [vmem:[%s1362 + $0x8] sm:$0xf]
  %v1366 = vld [vmem:[%s1362 + $0xc] sm:$0xf]
  %v1367 = vld [vmem:[%s1362 + $0x10] sm:$0xf]
  %v1368 = vld [vmem:[%s1362 + $0x14] sm:$0xf]
  %v1369 = vld [vmem:[%s1362 + $0x18] sm:$0xf]
  %v1370 = vld [vmem:[%s1362 + $0x1c] sm:$0xf]
  %v1371 = vld [vmem:[%s1362 + $0x20] sm:$0xf]
  %v1372 = vld [vmem:[%s1362 + $0x24] sm:$0xf]
  %v1373 = vld [vmem:[%s1362 + $0x28] sm:$0xf]
  %v1374 = vld [vmem:[%s1362 + $0x2c] sm:$0xf]
  %v1375 = vld [vmem:[%s1362 + $0x30] sm:$0xf]
  %v1376 = vld [vmem:[%s1362 + $0x34] sm:$0xf]
  %v1377 = vld [vmem:[%s1362 + $0x38] sm:$0xf]
  %v1378 = vld [vmem:[%s1362 + $0x3c] sm:$0xf]
  %v1379 = vpack.c.bf16 %v1361, %v1360
  %s1380 = scalar_lea.vmem %s12, 2
  %v1381 = vld [vmem:[%s1380] sm:$0x1]
  %v1383 = vperm.slane %v1381, 0
  %v1401 = vunpack.c.l.b16 %v1363
  %v1402 = vunpack.c.l.b16 %v1364
  %v1403 = vunpack.c.l.b16 %v1365
  %v1404 = vunpack.c.l.b16 %v1366
  %v1405 = vunpack.c.l.b16 %v1367
  %v1406 = vunpack.c.l.b16 %v1368
  %v1407 = vunpack.c.l.b16 %v1369
  %v1408 = vunpack.c.l.b16 %v1370
  %v1409 = vunpack.c.l.b16 %v1371
  %v1410 = vunpack.c.l.b16 %v1372
  %v1411 = vunpack.c.l.b16 %v1373
  %v1412 = vunpack.c.l.b16 %v1374
  %v1413 = vunpack.c.l.b16 %v1375
  %v1414 = vunpack.c.l.b16 %v1376
  %v1415 = vunpack.c.l.b16 %v1377
  %v1416 = vunpack.c.l.b16 %v1378
  %v1417 = vpack.c.b16 %v1402, %v1401
  %v1418 = vpack.c.b16 %v1404, %v1403
  %v1419 = vpack.c.b16 %v1406, %v1405
  %v1420 = vpack.c.b16 %v1408, %v1407
  %v1421 = vpack.c.b16 %v1410, %v1409
  %v1422 = vpack.c.b16 %v1412, %v1411
  %v1423 = vpack.c.b16 %v1414, %v1413
  %v1424 = vpack.c.b16 %v1416, %v1415
  %1433 = vmatpush.bf16.msra.mxu0 %v1424
  %1434 = vmatpush.bf16.msra.mxu0 %v1423
  %1435 = vmatpush.bf16.msra.mxu0 %v1422
  %1436 = vmatpush.bf16.msra.mxu0 %v1421
  %1437 = vmatpush.bf16.msra.mxu0 %v1420
  %1438 = vmatpush.bf16.msra.mxu0 %v1419
  %1439 = vmatpush.bf16.msra.mxu0 %v1418
  %1440 = vmatpush.bf16.msra.mxu0 %v1417
  %1441 = vmatmul.bf16.gmra.mxu0 %v1379
  %v1442 = vpop.f32.mrf.mxu0
  %v1443 = vadd.f32 %v1383, %v1442
  %v1444 = vpop.f32.mrf.mxu0
  %v1445 = vadd.f32 %v1383, %v1444
  %1446 = vdwg.mxu0
  %v1447 = vmax.f32 %v1443, 0.0
  %v1448 = vmax.f32 %v1445, 0.0
  %1455 = vrot.lane.b32.xlu0 %v1329, 64
  %v1456 = vpop.permute.xlu0 %1455
  %1457 = vrot.lane.b32.xlu0 %v1330, 64
  %v1458 = vpop.permute.xlu0 %1457
  %1459 = vrot.lane.b32.xlu0 %v1331, 64
  %v1460 = vpop.permute.xlu0 %1459
  %1461 = vrot.lane.b32.xlu0 %v1332, 64
  %v1462 = vpop.permute.xlu0 %1461
  %1463 = vrot.lane.b32.xlu0 %v1333, 64
  %v1464 = vpop.permute.xlu0 %1463
  %1465 = vrot.lane.b32.xlu0 %v1334, 64
  %v1466 = vpop.permute.xlu0 %1465
  %v1473 = vsel %vm337, %v1158, %v1456
  %v1474 = vsel %vm337, %v1159, %v1458
  %v1475 = vsel %vm337, %v1160, %v1460
  %v1476 = vsel %vm337, %v1161, %v1462
  %v1477 = vsel %vm337, %v1162, %v1464
  %v1478 = vsel %vm337, %v1163, %v1466
  %s1479 = scalar_lea.vmem %s13, 128
  %v1480 = vld [vmem:[%s1479] sm:$0xf]
  %v1481 = vld [vmem:[%s1479 + $0x4] sm:$0xf]
  %v1482 = vld [vmem:[%s1479 + $0x8] sm:$0xf]
  %v1483 = vld [vmem:[%s1479 + $0xc] sm:$0xf]
  %v1484 = vld [vmem:[%s1479 + $0x10] sm:$0xf]
  %v1485 = vld [vmem:[%s1479 + $0x14] sm:$0xf]
  %v1486 = vld [vmem:[%s1479 + $0x18] sm:$0xf]
  %v1487 = vld [vmem:[%s1479 + $0x1c] sm:$0xf]
  %v1488 = vld [vmem:[%s1479 + $0x20] sm:$0xf]
  %v1489 = vld [vmem:[%s1479 + $0x24] sm:$0xf]
  %v1490 = vld [vmem:[%s1479 + $0x28] sm:$0xf]
  %v1491 = vld [vmem:[%s1479 + $0x2c] sm:$0xf]
  %v1492 = vld [vmem:[%s1479 + $0x30] sm:$0xf]
  %v1493 = vld [vmem:[%s1479 + $0x34] sm:$0xf]
  %v1494 = vld [vmem:[%s1479 + $0x38] sm:$0xf]
  %v1495 = vld [vmem:[%s1479 + $0x3c] sm:$0xf]
  %v1496 = vpack.c.bf16 %v1474, %v1473
  %v1497 = vpack.c.bf16 %v1476, %v1475
  %v1498 = vpack.c.bf16 %v1478, %v1477
  %s1499 = scalar_lea.vmem %s14, 2
  %v1500 = vld [vmem:[%s1499] sm:$0x1]
  %v1502 = vperm.slane %v1500, 0
  %v1520 = vunpack.c.l.b16 %v1480
  %v1521 = vunpack.c.l.b16 %v1481
  %v1522 = vunpack.c.l.b16 %v1482
  %v1523 = vunpack.c.l.b16 %v1483
  %v1524 = vunpack.c.l.b16 %v1484
  %v1525 = vunpack.c.l.b16 %v1485
  %v1526 = vunpack.c.l.b16 %v1486
  %v1527 = vunpack.c.l.b16 %v1487
  %v1528 = vunpack.c.l.b16 %v1488
  %v1529 = vunpack.c.l.b16 %v1489
  %v1530 = vunpack.c.l.b16 %v1490
  %v1531 = vunpack.c.l.b16 %v1491
  %v1532 = vunpack.c.l.b16 %v1492
  %v1533 = vunpack.c.l.b16 %v1493
  %v1534 = vunpack.c.l.b16 %v1494
  %v1535 = vunpack.c.l.b16 %v1495
  %v1536 = vpack.c.b16 %v1521, %v1520
  %v1537 = vpack.c.b16 %v1523, %v1522
  %v1538 = vpack.c.b16 %v1525, %v1524
  %v1539 = vpack.c.b16 %v1527, %v1526
  %v1540 = vpack.c.b16 %v1529, %v1528
  %v1541 = vpack.c.b16 %v1531, %v1530
  %v1542 = vpack.c.b16 %v1533, %v1532
  %v1543 = vpack.c.b16 %v1535, %v1534
  %1552 = vmatpush.bf16.msra.mxu0 %v1543
  %1553 = vmatpush.bf16.msra.mxu0 %v1542
  %1554 = vmatpush.bf16.msra.mxu0 %v1541
  %1555 = vmatpush.bf16.msra.mxu0 %v1540
  %1556 = vmatpush.bf16.msra.mxu0 %v1539
  %1557 = vmatpush.bf16.msra.mxu0 %v1538
  %1558 = vmatpush.bf16.msra.mxu0 %v1537
  %1559 = vmatpush.bf16.msra.mxu0 %v1536
  %1560 = vmatmul.bf16.gmra.mxu0 %v1496
  %v1561 = vpop.f32.mrf.mxu0
  %v1562 = vadd.f32 %v1502, %v1561
  %v1563 = vpop.f32.mrf.mxu0
  %v1564 = vadd.f32 %v1502, %v1563
  %1565 = vmatmul.bf16.gmra.mxu0 %v1497
  %v1566 = vpop.f32.mrf.mxu0
  %v1567 = vadd.f32 %v1502, %v1566
  %v1568 = vpop.f32.mrf.mxu0
  %v1569 = vadd.f32 %v1502, %v1568
  %1570 = vmatmul.bf16.gmra.mxu0 %v1498
  %v1571 = vpop.f32.mrf.mxu0
  %v1572 = vadd.f32 %v1502, %v1571
  %v1573 = vpop.f32.mrf.mxu0
  %v1574 = vadd.f32 %v1502, %v1573
  %1575 = vdwg.mxu0
  %v1576 = vmax.f32 %v1562, 0.0
  %v1577 = vmax.f32 %v1564, 0.0
  %v1578 = vmax.f32 %v1567, 0.0
  %v1579 = vmax.f32 %v1569, 0.0
  %v1580 = vmax.f32 %v1572, 0.0
  %v1581 = vmax.f32 %v1574, 0.0
  %s1582 = scalar_lea.vmem %s8, 96
  %v1583 = vld [vmem:[%s1582] sm:$0xf]
  %v1584 = vld [vmem:[%s1582 + $0x4] sm:$0xf]
  %v1585 = vld [vmem:[%s1582 + $0x8] sm:$0xf]
  %v1586 = vld [vmem:[%s1582 + $0xc] sm:$0xf]
  %v1587 = vld [vmem:[%s1582 + $0x10] sm:$0xf]
  %v1588 = vld [vmem:[%s1582 + $0x14] sm:$0xf]
  %v1589 = vld [vmem:[%s1582 + $0x18] sm:$0xf]
  %v1590 = vld [vmem:[%s1582 + $0x1c] sm:$0xf]
  %v1591 = vpack.c.bf16 %v1448, %v1447
  %v1600 = vunpack.c.l.b16 %v1583
  %v1601 = vunpack.c.l.b16 %v1584
  %v1602 = vunpack.c.l.b16 %v1585
  %v1603 = vunpack.c.l.b16 %v1586
  %v1604 = vunpack.c.l.b16 %v1587
  %v1605 = vunpack.c.l.b16 %v1588
  %v1606 = vunpack.c.l.b16 %v1589
  %v1607 = vunpack.c.l.b16 %v1590
  %v1608 = vpack.c.b16 %v1601, %v1600
  %v1609 = vpack.c.b16 %v1603, %v1602
  %v1610 = vpack.c.b16 %v1605, %v1604
  %v1611 = vpack.c.b16 %v1607, %v1606
  %v1617 = vsel %vm337, %v1591, 0
  %1619 = vmatpush.bf16.msra.mxu0 0
  %1620 = vmatpush.bf16.msra.mxu0 0
  %1621 = vmatpush.bf16.msra.mxu0 0
  %1622 = vmatpush.bf16.msra.mxu0 0
  %1623 = vmatpush.bf16.msra.mxu0 %v1611
  %1624 = vmatpush.bf16.msra.mxu0 %v1610
  %1625 = vmatpush.bf16.msra.mxu0 %v1609
  %1626 = vmatpush.bf16.msra.mxu0 %v1608
  %1627 = vmatmul.bf16.gmra.mxu0 %v1617
  %v1628 = vpop.f32.mrf.mxu0
  %v1629 = vadd.f32 0.0, %v1628
  %v1630 = vpop.f32.mrf.mxu0
  %v1631 = vadd.f32 0.0, %v1630
  %1632 = vdwg.mxu0
  %1635 = vrot.lane.b32.xlu0 %v1629, 64
  %v1636 = vpop.permute.xlu0 %1635
  %1637 = vrot.lane.b32.xlu0 %v1631, 64
  %v1638 = vpop.permute.xlu0 %1637
  %v1641 = vpack.c.bf16 %v1631, %v1629
  %v1642 = vpack.c.bf16 %v1638, %v1636
  %s1643 = scalar_lea.vmem %s9, 96
  %v1644 = vld [vmem:[%s1643] sm:$0xf]
  %v1645 = vld [vmem:[%s1643 + $0x4] sm:$0xf]
  %v1646 = vld [vmem:[%s1643 + $0x8] sm:$0xf]
  %v1647 = vld [vmem:[%s1643 + $0xc] sm:$0xf]
  %v1648 = vld [vmem:[%s1643 + $0x10] sm:$0xf]
  %v1649 = vld [vmem:[%s1643 + $0x14] sm:$0xf]
  %v1650 = vld [vmem:[%s1643 + $0x18] sm:$0xf]
  %v1651 = vld [vmem:[%s1643 + $0x1c] sm:$0xf]
  %v1652 = vpack.c.bf16 %v1577, %v1576
  %v1653 = vpack.c.bf16 %v1579, %v1578
  %v1654 = vpack.c.bf16 %v1581, %v1580
  %v1663 = vunpack.c.l.b16 %v1644
  %v1664 = vunpack.c.l.b16 %v1645
  %v1665 = vunpack.c.l.b16 %v1646
  %v1666 = vunpack.c.l.b16 %v1647
  %v1667 = vunpack.c.l.b16 %v1648
  %v1668 = vunpack.c.l.b16 %v1649
  %v1669 = vunpack.c.l.b16 %v1650
  %v1670 = vunpack.c.l.b16 %v1651
  %v1671 = vpack.c.b16 %v1664, %v1663
  %v1672 = vpack.c.b16 %v1666, %v1665
  %v1673 = vpack.c.b16 %v1668, %v1667
  %v1674 = vpack.c.b16 %v1670, %v1669
  %v1680 = vsel %vm337, %v1652, 0
  %v1683 = vsel %vm337, %v1653, 0
  %v1686 = vsel %vm337, %v1654, 0
  %1688 = vmatpush.bf16.msra.mxu0 0
  %1689 = vmatpush.bf16.msra.mxu0 0
  %1690 = vmatpush.bf16.msra.mxu0 0
  %1691 = vmatpush.bf16.msra.mxu0 0
  %1692 = vmatpush.bf16.msra.mxu0 %v1674
  %1693 = vmatpush.bf16.msra.mxu0 %v1673
  %1694 = vmatpush.bf16.msra.mxu0 %v1672
  %1695 = vmatpush.bf16.msra.mxu0 %v1671
  %1696 = vmatmul.bf16.gmra.mxu0 %v1680
  %v1697 = vpop.f32.mrf.mxu0
  %v1698 = vadd.f32 0.0, %v1697
  %v1699 = vpop.f32.mrf.mxu0
  %v1700 = vadd.f32 0.0, %v1699
  %1701 = vmatmul.bf16.gmra.mxu0 %v1683
  %v1702 = vpop.f32.mrf.mxu0
  %v1703 = vadd.f32 0.0, %v1702
  %v1704 = vpop.f32.mrf.mxu0
  %v1705 = vadd.f32 0.0, %v1704
  %1706 = vmatmul.bf16.gmra.mxu0 %v1686
  %v1707 = vpop.f32.mrf.mxu0
  %v1708 = vadd.f32 0.0, %v1707
  %v1709 = vpop.f32.mrf.mxu0
  %v1710 = vadd.f32 0.0, %v1709
  %1711 = vdwg.mxu0
  %1712 = vmatpush.bf16.msra.mxu0 0
  %1713 = vmatpush.bf16.msra.mxu0 0
  %1714 = vmatpush.bf16.msra.mxu0 0
  %1715 = vmatpush.bf16.msra.mxu0 0
  %1716 = vmatpush.bf16.msra.mxu0 0
  %1717 = vmatpush.bf16.msra.mxu0 0
  %1718 = vmatpush.bf16.msra.mxu0 %v1642
  %1719 = vmatpush.bf16.msra.mxu0 %v1641
  %1720 = vmatmul.bf16.gmra.mxu0 %v435
  %v1721 = vpop.f32.mrf.mxu0
  %v1722 = vadd.f32 %v1698, %v1721
  %v1723 = vpop.f32.mrf.mxu0
  %v1724 = vadd.f32 %v1700, %v1723
  %1725 = vmatmul.bf16.gmra.mxu0 %v438
  %v1726 = vpop.f32.mrf.mxu0
  %v1727 = vadd.f32 %v1703, %v1726
  %v1728 = vpop.f32.mrf.mxu0
  %v1729 = vadd.f32 %v1705, %v1728
  %1730 = vmatmul.bf16.gmra.mxu0 %v441
  %v1731 = vpop.f32.mrf.mxu0
  %v1732 = vadd.f32 %v1708, %v1731
  %v1733 = vpop.f32.mrf.mxu0
  %v1734 = vadd.f32 %v1710, %v1733
  %1735 = vdwg.mxu0
  %s1736 = scalar_lea.vmem %s10, 3
  %v1737 = vld [vmem:[%s1736] sm:$0x1]
  %v1739 = vperm.slane %v1737, 0
  %v1741 = vadd.f32 %v1722, %v1739
  %v1742 = vadd.f32 %v1724, %v1739
  %v1743 = vadd.f32 %v1727, %v1739
  %v1744 = vadd.f32 %v1729, %v1739
  %v1745 = vadd.f32 %v1732, %v1739
  %v1746 = vadd.f32 %v1734, %v1739
  %v1747 = vmax.f32 %v1741, 0.0
  %v1748 = vmax.f32 %v1742, 0.0
  %v1749 = vmax.f32 %v1743, 0.0
  %v1750 = vmax.f32 %v1744, 0.0
  %v1751 = vmax.f32 %v1745, 0.0
  %v1752 = vmax.f32 %v1746, 0.0
  %v1753 = vpack.c.bf16 %v1748, %v1747
  %v1754 = vpack.c.bf16 %v1750, %v1749
  %v1755 = vpack.c.bf16 %v1752, %v1751
  %1756 = vmatpush.bf16.msra.mxu0 0
  %1757 = vmatpush.bf16.msra.mxu0 0
  %1758 = vmatpush.bf16.msra.mxu0 0
  %1759 = vmatpush.bf16.msra.mxu0 0
  %1760 = vmatpush.bf16.msra.mxu0 0
  %1761 = vmatpush.bf16.msra.mxu0 %v1755
  %1762 = vmatpush.bf16.msra.mxu0 %v1754
  %1763 = vmatpush.bf16.msra.mxu0 %v1753
  %1764 = vmatmul.bf16.gmra.mxu0 %v504
  %v1765 = vpop.f32.mrf.mxu0
  %v1766 = vadd.f32 0.0, %v1765
  %v1767 = vpop.f32.mrf.mxu0
  %v1768 = vadd.f32 0.0, %v1767
  %1769 = vdwg.mxu0
  %1772 = vrot.lane.b32.xlu0 %v1766, 64
  %v1773 = vpop.permute.xlu0 %1772
  %1774 = vrot.lane.b32.xlu0 %v1768, 64
  %v1775 = vpop.permute.xlu0 %1774
  %v1778 = vsel %vm337, %v1447, %v1773
  %v1779 = vsel %vm337, %v1448, %v1775
  %s1780 = scalar_lea.vmem %s11, 192
  %v1781 = vld [vmem:[%s1780] sm:$0xf]
  %v1782 = vld [vmem:[%s1780 + $0x4] sm:$0xf]
  %v1783 = vld [vmem:[%s1780 + $0x8] sm:$0xf]
  %v1784 = vld [vmem:[%s1780 + $0xc] sm:$0xf]
  %v1785 = vld [vmem:[%s1780 + $0x10] sm:$0xf]
  %v1786 = vld [vmem:[%s1780 + $0x14] sm:$0xf]
  %v1787 = vld [vmem:[%s1780 + $0x18] sm:$0xf]
  %v1788 = vld [vmem:[%s1780 + $0x1c] sm:$0xf]
  %v1789 = vld [vmem:[%s1780 + $0x20] sm:$0xf]
  %v1790 = vld [vmem:[%s1780 + $0x24] sm:$0xf]
  %v1791 = vld [vmem:[%s1780 + $0x28] sm:$0xf]
  %v1792 = vld [vmem:[%s1780 + $0x2c] sm:$0xf]
  %v1793 = vld [vmem:[%s1780 + $0x30] sm:$0xf]
  %v1794 = vld [vmem:[%s1780 + $0x34] sm:$0xf]
  %v1795 = vld [vmem:[%s1780 + $0x38] sm:$0xf]
  %v1796 = vld [vmem:[%s1780 + $0x3c] sm:$0xf]
  %v1797 = vpack.c.bf16 %v1779, %v1778
  %s1798 = scalar_lea.vmem %s12, 3
  %v1799 = vld [vmem:[%s1798] sm:$0x1]
  %v1801 = vperm.slane %v1799, 0
  %v1819 = vunpack.c.l.b16 %v1781
  %v1820 = vunpack.c.l.b16 %v1782
  %v1821 = vunpack.c.l.b16 %v1783
  %v1822 = vunpack.c.l.b16 %v1784
  %v1823 = vunpack.c.l.b16 %v1785
  %v1824 = vunpack.c.l.b16 %v1786
  %v1825 = vunpack.c.l.b16 %v1787
  %v1826 = vunpack.c.l.b16 %v1788
  %v1827 = vunpack.c.l.b16 %v1789
  %v1828 = vunpack.c.l.b16 %v1790
  %v1829 = vunpack.c.l.b16 %v1791
  %v1830 = vunpack.c.l.b16 %v1792
  %v1831 = vunpack.c.l.b16 %v1793
  %v1832 = vunpack.c.l.b16 %v1794
  %v1833 = vunpack.c.l.b16 %v1795
  %v1834 = vunpack.c.l.b16 %v1796
  %v1835 = vpack.c.b16 %v1820, %v1819
  %v1836 = vpack.c.b16 %v1822, %v1821
  %v1837 = vpack.c.b16 %v1824, %v1823
  %v1838 = vpack.c.b16 %v1826, %v1825
  %v1839 = vpack.c.b16 %v1828, %v1827
  %v1840 = vpack.c.b16 %v1830, %v1829
  %v1841 = vpack.c.b16 %v1832, %v1831
  %v1842 = vpack.c.b16 %v1834, %v1833
  %1851 = vmatpush.bf16.msra.mxu0 %v1842
  %1852 = vmatpush.bf16.msra.mxu0 %v1841
  %1853 = vmatpush.bf16.msra.mxu0 %v1840
  %1854 = vmatpush.bf16.msra.mxu0 %v1839
  %1855 = vmatpush.bf16.msra.mxu0 %v1838
  %1856 = vmatpush.bf16.msra.mxu0 %v1837
  %1857 = vmatpush.bf16.msra.mxu0 %v1836
  %1858 = vmatpush.bf16.msra.mxu0 %v1835
  %1859 = vmatmul.bf16.gmra.mxu0 %v1797
  %v1860 = vpop.f32.mrf.mxu0
  %v1861 = vadd.f32 %v1801, %v1860
  %v1862 = vpop.f32.mrf.mxu0
  %v1863 = vadd.f32 %v1801, %v1862
  %1864 = vdwg.mxu0
  %v1865 = vmax.f32 %v1861, 0.0
  %v1866 = vmax.f32 %v1863, 0.0
  %1873 = vrot.lane.b32.xlu0 %v1747, 64
  %v1874 = vpop.permute.xlu0 %1873
  %1875 = vrot.lane.b32.xlu0 %v1748, 64
  %v1876 = vpop.permute.xlu0 %1875
  %1877 = vrot.lane.b32.xlu0 %v1749, 64
  %v1878 = vpop.permute.xlu0 %1877
  %1879 = vrot.lane.b32.xlu0 %v1750, 64
  %v1880 = vpop.permute.xlu0 %1879
  %1881 = vrot.lane.b32.xlu0 %v1751, 64
  %v1882 = vpop.permute.xlu0 %1881
  %1883 = vrot.lane.b32.xlu0 %v1752, 64
  %v1884 = vpop.permute.xlu0 %1883
  %v1891 = vsel %vm337, %v1576, %v1874
  %v1892 = vsel %vm337, %v1577, %v1876
  %v1893 = vsel %vm337, %v1578, %v1878
  %v1894 = vsel %vm337, %v1579, %v1880
  %v1895 = vsel %vm337, %v1580, %v1882
  %v1896 = vsel %vm337, %v1581, %v1884
  %s1897 = scalar_lea.vmem %s13, 192
  %v1898 = vld [vmem:[%s1897] sm:$0xf]
  %v1899 = vld [vmem:[%s1897 + $0x4] sm:$0xf]
  %v1900 = vld [vmem:[%s1897 + $0x8] sm:$0xf]
  %v1901 = vld [vmem:[%s1897 + $0xc] sm:$0xf]
  %v1902 = vld [vmem:[%s1897 + $0x10] sm:$0xf]
  %v1903 = vld [vmem:[%s1897 + $0x14] sm:$0xf]
  %v1904 = vld [vmem:[%s1897 + $0x18] sm:$0xf]
  %v1905 = vld [vmem:[%s1897 + $0x1c] sm:$0xf]
  %v1906 = vld [vmem:[%s1897 + $0x20] sm:$0xf]
  %v1907 = vld [vmem:[%s1897 + $0x24] sm:$0xf]
  %v1908 = vld [vmem:[%s1897 + $0x28] sm:$0xf]
  %v1909 = vld [vmem:[%s1897 + $0x2c] sm:$0xf]
  %v1910 = vld [vmem:[%s1897 + $0x30] sm:$0xf]
  %v1911 = vld [vmem:[%s1897 + $0x34] sm:$0xf]
  %v1912 = vld [vmem:[%s1897 + $0x38] sm:$0xf]
  %v1913 = vld [vmem:[%s1897 + $0x3c] sm:$0xf]
  %v1914 = vpack.c.bf16 %v1892, %v1891
  %v1915 = vpack.c.bf16 %v1894, %v1893
  %v1916 = vpack.c.bf16 %v1896, %v1895
  %s1917 = scalar_lea.vmem %s14, 3
  %v1918 = vld [vmem:[%s1917] sm:$0x1]
  %v1920 = vperm.slane %v1918, 0
  %v1938 = vunpack.c.l.b16 %v1898
  %v1939 = vunpack.c.l.b16 %v1899
  %v1940 = vunpack.c.l.b16 %v1900
  %v1941 = vunpack.c.l.b16 %v1901
  %v1942 = vunpack.c.l.b16 %v1902
  %v1943 = vunpack.c.l.b16 %v1903
  %v1944 = vunpack.c.l.b16 %v1904
  %v1945 = vunpack.c.l.b16 %v1905
  %v1946 = vunpack.c.l.b16 %v1906
  %v1947 = vunpack.c.l.b16 %v1907
  %v1948 = vunpack.c.l.b16 %v1908
  %v1949 = vunpack.c.l.b16 %v1909
  %v1950 = vunpack.c.l.b16 %v1910
  %v1951 = vunpack.c.l.b16 %v1911
  %v1952 = vunpack.c.l.b16 %v1912
  %v1953 = vunpack.c.l.b16 %v1913
  %v1954 = vpack.c.b16 %v1939, %v1938
  %v1955 = vpack.c.b16 %v1941, %v1940
  %v1956 = vpack.c.b16 %v1943, %v1942
  %v1957 = vpack.c.b16 %v1945, %v1944
  %v1958 = vpack.c.b16 %v1947, %v1946
  %v1959 = vpack.c.b16 %v1949, %v1948
  %v1960 = vpack.c.b16 %v1951, %v1950
  %v1961 = vpack.c.b16 %v1953, %v1952
  %1970 = vmatpush.bf16.msra.mxu0 %v1961
  %1971 = vmatpush.bf16.msra.mxu0 %v1960
  %1972 = vmatpush.bf16.msra.mxu0 %v1959
  %1973 = vmatpush.bf16.msra.mxu0 %v1958
  %1974 = vmatpush.bf16.msra.mxu0 %v1957
  %1975 = vmatpush.bf16.msra.mxu0 %v1956
  %1976 = vmatpush.bf16.msra.mxu0 %v1955
  %1977 = vmatpush.bf16.msra.mxu0 %v1954
  %1978 = vmatmul.bf16.gmra.mxu0 %v1914
  %v1979 = vpop.f32.mrf.mxu0
  %v1980 = vadd.f32 %v1920, %v1979
  %v1981 = vpop.f32.mrf.mxu0
  %v1982 = vadd.f32 %v1920, %v1981
  %1983 = vmatmul.bf16.gmra.mxu0 %v1915
  %v1984 = vpop.f32.mrf.mxu0
  %v1985 = vadd.f32 %v1920, %v1984
  %v1986 = vpop.f32.mrf.mxu0
  %v1987 = vadd.f32 %v1920, %v1986
  %1988 = vmatmul.bf16.gmra.mxu0 %v1916
  %v1989 = vpop.f32.mrf.mxu0
  %v1990 = vadd.f32 %v1920, %v1989
  %v1991 = vpop.f32.mrf.mxu0
  %v1992 = vadd.f32 %v1920, %v1991
  %1993 = vdwg.mxu0
  %v1994 = vmax.f32 %v1980, 0.0
  %v1995 = vmax.f32 %v1982, 0.0
  %v1996 = vmax.f32 %v1985, 0.0
  %v1997 = vmax.f32 %v1987, 0.0
  %v1998 = vmax.f32 %v1990, 0.0
  %v1999 = vmax.f32 %v1992, 0.0
  %v2000 = vld [vmem:[%s15] sm:$0x1]
  %v2002 = vperm.slane %v2000, 0
  %v2004 = vmul.f32 %v1865, %v2002
  %v2005 = vmul.f32 %v1866, %v2002
  %v2006 = vsel %vm337, %v2004, 0.0
  %2007 = vadd.xlane.f32.xlu0 %v2006
  %v2008 = vpop.xlane.xlu0 %2007
  %v2009 = vsel %vm337, %v2005, 0.0
  %2010 = vadd.xlane.f32.xlu0 %v2009
  %v2011 = vpop.xlane.xlu0 %2010
  %v2012 = vld [vmem:[#allocation2] sm:$0x1]
  %v2014 = vperm.slane %v2012, 0
  %v2016 = vadd.f32 %v2008, %v2014
  %v2017 = vadd.f32 %v2011, %v2014
  %vm2018 = vcmask 7168
  %2019 = vst.msk [vmem:[%s19] sm:$0xff] %vm2018, %v2016
  %2020 = vst.msk [vmem:[%s19 + $0x8] sm:$0xff] %vm2018, %v2017
  %v2021 = vld [vmem:[%s17] sm:$0x1]
  %v2023 = vperm.slane %v2021, 0
  %v2025 = vmul.f32 %v1994, %v2023
  %v2026 = vmul.f32 %v1995, %v2023
  %v2027 = vmul.f32 %v1996, %v2023
  %v2028 = vmul.f32 %v1997, %v2023
  %v2029 = vmul.f32 %v1998, %v2023
  %v2030 = vmul.f32 %v1999, %v2023
  %v2031 = vsel %vm337, %v2025, 0.0
  %2032 = vadd.xlane.f32.xlu0 %v2031
  %v2033 = vpop.xlane.xlu0 %2032
  %v2034 = vsel %vm337, %v2026, 0.0
  %2035 = vadd.xlane.f32.xlu0 %v2034
  %v2036 = vpop.xlane.xlu0 %2035
  %v2037 = vsel %vm337, %v2027, 0.0
  %2038 = vadd.xlane.f32.xlu0 %v2037
  %v2039 = vpop.xlane.xlu0 %2038
  %v2040 = vsel %vm337, %v2028, 0.0
  %2041 = vadd.xlane.f32.xlu0 %v2040
  %v2042 = vpop.xlane.xlu0 %2041
  %v2043 = vsel %vm337, %v2029, 0.0
  %2044 = vadd.xlane.f32.xlu0 %v2043
  %v2045 = vpop.xlane.xlu0 %2044
  %v2046 = vsel %vm337, %v2030, 0.0
  %2047 = vadd.xlane.f32.xlu0 %v2046
  %v2048 = vpop.xlane.xlu0 %2047
  %v2049 = vld [vmem:[#allocation3] sm:$0x1]
  %v2051 = vperm.slane %v2049, 0
  %v2053 = vadd.f32 %v2033, %v2051
  %v2054 = vadd.f32 %v2036, %v2051
  %v2055 = vadd.f32 %v2039, %v2051
  %v2056 = vadd.f32 %v2042, %v2051
  %v2057 = vadd.f32 %v2045, %v2051
  %v2058 = vadd.f32 %v2048, %v2051
  %2059 = vst.msk [vmem:[%s20] sm:$0xff] %vm2018, %v2053
  %2060 = vst.msk [vmem:[%s20 + $0x8] sm:$0xff] %vm2018, %v2054
  %2061 = vst.msk [vmem:[%s20 + $0x10] sm:$0xff] %vm2018, %v2055
  %2062 = vst.msk [vmem:[%s20 + $0x18] sm:$0xff] %vm2018, %v2056
  %2063 = vst.msk [vmem:[%s20 + $0x20] sm:$0xff] %vm2018, %v2057
  %2064 = vst.msk [vmem:[%s20 + $0x28] sm:$0xff] %vm2018, %v2058
  // Predicated region
  $region78: #{run.1} parent=0 // pred_check
    _
  $region79: #{run.1} parent=0 // pred_check_branch
    %2066 = sbr.rel (0) target = $region81
  $region80: #{run.1} parent=0 // pred_region
    _
  $region81: #{run.1} parent=0 // pred_fallthru
    _
  // Predicated region
  $region82: #{run.1} parent=0 // pred_check
    _
  $region83: #{run.1} parent=0 // pred_check_branch
    %2068 = sbr.rel (0) target = $region85
  $region84: #{run.1} parent=0 // pred_region
    _
  $region85: #{run.1} parent=0 // pred_fallthru
    _
  // Predicated region
  $region86: #{run.1} parent=0 // pred_check
    _
  $region87: #{run.1} parent=0 // pred_check_branch
    %2070 = sbr.rel (0) target = $region89
  $region88: #{run.1} parent=0 // pred_region
    _
  $region89: #{run.1} parent=0 // pred_fallthru
    _
  // Predicated region
  $region90: #{run.1} parent=0 // pred_check
    _
  $region91: #{run.1} parent=0 // pred_check_branch
    %2072 = sbr.rel (0) target = $region93
  $region92: #{run.1} parent=0 // pred_region
    _
  $region93: #{run.1} parent=0 // pred_fallthru
    _

</llo_original>
